<compile_context>
chip_gen: v6e
topology: v6e:2x2x1
jax: 0.10.0
libtpu: 0.0.40
codegen_flags: <defaults>
</compile_context>

<pallas_src>
import jax
import jax.numpy as jnp
from jax import lax
from jax.experimental import pallas as pl
from jax.experimental.pallas import tpu as pltpu

_LANE = 128
_SUBLANE = 8


def _round_up(n, m):
    return ((n + m - 1) // m) * m


def _pad_axis(x, axis, size):
    pad = size - x.shape[axis]
    if pad <= 0:
        return x
    widths = [(0, 0)] * x.ndim
    widths[axis] = (0, pad)
    return jnp.pad(x, widths)


def _make_kernel(Tb, D_pad, H_pad):
    """Kernel factory: one grid step = Tb timesteps for one batch block.

    grid = (num_batch_blocks, T_pad // Tb); time is the INNERMOST grid axis
    ("arbitrary") and the hidden state is carried in a VMEM scratch that is
    (re-)initialized at time-block 0 for every batch block -- do not reorder
    the grid without preserving this invariant.
    """

    def kernel(d_ref, h0_ref, w_ref, b_ref, out_ref, h_scr, x_scr):
        tb = pl.program_id(1)

        @pl.when(tb == 0)
        def _():
            h_scr[...] = h0_ref[...]            # (B_blk, H_pad) f32

        def step(i, h):
            # Stage x_cat = [d_t | h_{t-1}]; both halves land on a 128-lane
            # boundary so the concat is just two aligned VMEM stores.
            x_scr[:, :D_pad] = d_ref[i]
            x_scr[:, D_pad:] = h.astype(x_scr.dtype)
            # Single fused MXU push: [hidden_t | output_t] =
            #   x_cat @ [[W_d, W_d@W_o], [W_h, W_h@W_o]] + [b_ih | b_o']
            res = jnp.dot(x_scr[...], w_ref[...],
                          preferred_element_type=jnp.float32) + b_ref[...]
            out_ref[i] = res.astype(out_ref.dtype)   # one lane-dense 256-wide store
            return res[:, :H_pad]                    # carry hidden in f32

        # Unrolled so the LLO scheduler can overlap step i+1's staging/matmul
        # with step i's tail.
        h_final = lax.fori_loop(0, Tb, step, h_scr[...], unroll=True)
        h_scr[...] = h_final                         # carry across time blocks

    return kernel


def rnn_forward_seq(data_seq, h0, w_i2h, b_i2h, w_h2o, b_h2o,
                    *, compute_dtype=jnp.float32):
    """Run T recurrent steps of the PyTorch RNN module in ONE pallas_call.

    data_seq: (T, B, D), h0: (B, H)
    w_i2h: (H, D+H) torch layout, b_i2h: (H,)
    w_h2o: (O, H)   torch layout, b_h2o: (O,)
    Returns (hidden_seq (T,B,H), output_seq (T,B,O)), where
    hidden_seq[t], output_seq[t] == module.forward(data_seq[t], h_{t-1}).
    """
    T, B, D = data_seq.shape
    H = h0.shape[1]
    O = w_h2o.shape[0]

    D_pad = _round_up(D, _LANE)             # lane-dense data loads
    H_pad = _round_up(H, _LANE)             # lane-dense outputs (padding is 0)
    O_pad = _round_up(O, _LANE)

    # One big batch block (cap 128 rows) -> minimal grid steps. For v7x with
    # large B, prefer >= 2 blocks so the "parallel" axis feeds both TCs.
    B_pad = _round_up(B, _SUBLANE)
    B_blk = min(B_pad, _LANE)
    B_pad = _round_up(B_pad, B_blk)
    nb = B_pad // B_blk

    # Time blocking: Tb timesteps per grid step (unrolled in-kernel). Padded
    # tail timesteps (zero data) run only AFTER all real steps, so they cannot
    # corrupt the real recurrence; their outputs are sliced off below.
    Tb = max(1, min(T, 8))
    T_pad = _round_up(T, Tb)
    n_tb = T_pad // Tb

    hp = jax.lax.Precision.HIGHEST

    # ---- one-time weight prep (hoisted out of the time loop) ----
    w_i2h_t = w_i2h.T.astype(jnp.float32)                              # (D+H, H)
    w_d = _pad_axis(_pad_axis(w_i2h_t[:D], 0, D_pad), 1, H_pad)        # (D_pad, H_pad)
    w_h = _pad_axis(_pad_axis(w_i2h_t[D:], 0, H_pad), 1, H_pad)        # (H_pad, H_pad)
    b_ih = _pad_axis(b_i2h.reshape(1, H).astype(jnp.float32), 1, H_pad)
    w_o = _pad_axis(_pad_axis(w_h2o.T.astype(jnp.float32), 0, H_pad), 1, O_pad)

    # Pre-fuse h2o through i2h (no nonlinearity between them in the module).
    # NOTE: this trades B*H*O output-path FLOPs for B*(D+H)*O; revisit if D >> H.
    w_do = jnp.dot(w_d, w_o, precision=hp)                             # (D_pad, O_pad)
    w_ho = jnp.dot(w_h, w_o, precision=hp)                             # (H_pad, O_pad)
    b_o = jnp.dot(b_ih, w_o, precision=hp) + _pad_axis(
        b_h2o.reshape(1, O).astype(jnp.float32), 1, O_pad)             # (1, O_pad)

    # Combined weight: rows = [d | h], cols = [hidden | output].
    # Matmul operands in compute_dtype (bf16 OK on v5e/v6e/v7x MXUs); bias
    # adds stay f32 (v5e VPU has no bf16); accumulation always f32.
    w_all = jnp.block([[w_d, w_do], [w_h, w_ho]]).astype(compute_dtype)
    b_all = jnp.concatenate([b_ih, b_o], axis=1)                       # (1, 256) f32

    data_p = _pad_axis(_pad_axis(_pad_axis(data_seq, 0, T_pad), 1, B_pad),
                       2, D_pad).astype(compute_dtype)
    h0_p = _pad_axis(_pad_axis(h0, 0, B_pad), 1, H_pad).astype(jnp.float32)

    operands = (data_p, h0_p, w_all, b_all)
    out_lanes = H_pad + O_pad
    cost = pl.CostEstimate(
        flops=int(2 * T_pad * B_pad * (D_pad + H_pad) * out_lanes),
        transcendentals=0,
        bytes_accessed=int(sum(x.size * x.dtype.itemsize for x in operands)
                           + T_pad * B_pad * out_lanes * 4),
    )

    kernel = _make_kernel(Tb, D_pad, H_pad)

    combined = pl.pallas_call(
        kernel,
        grid=(nb, n_tb),
        in_specs=[
            pl.BlockSpec((Tb, B_blk, D_pad), lambda b, t: (t, b, 0)),     # data block
            pl.BlockSpec((B_blk, H_pad), lambda b, t: (b, 0)),            # h0
            # Constant index_maps -> weights/bias stay VMEM-resident across
            # the whole grid (tiny at these sizes; if H/D scale up, single-
            # buffer them and set vmem_limit_bytes for v7x's 64 MiB VMEM).
            pl.BlockSpec((D_pad + H_pad, out_lanes), lambda b, t: (0, 0)),
            pl.BlockSpec((1, out_lanes), lambda b, t: (0, 0)),
        ],
        out_specs=pl.BlockSpec((Tb, B_blk, out_lanes), lambda b, t: (t, b, 0)),
        out_shape=jax.ShapeDtypeStruct((T_pad, B_pad, out_lanes), jnp.float32),
        scratch_shapes=[
            pltpu.VMEM((B_blk, H_pad), jnp.float32),          # hidden carry
            pltpu.VMEM((B_blk, D_pad + H_pad), compute_dtype),  # x_cat staging
        ],
        compiler_params=pltpu.CompilerParams(
            # batch blocks independent (v7x megacore); time must stay serial.
            dimension_semantics=("parallel", "arbitrary"),
        ),
        cost_estimate=cost,
    )(*operands)

    hid_seq = combined[:T, :B, :H]
    out_seq = combined[:T, :B, H_pad:H_pad + O]
    return hid_seq, out_seq


def rnn_forward(data, last_hidden, w_i2h, b_i2h, w_h2o, b_h2o, **kw):
    """Single-step forward: identical semantics to the PyTorch module."""
    hid, out = rnn_forward_seq(data[None], last_hidden,
                               w_i2h, b_i2h, w_h2o, b_h2o, **kw)
    return hid[0], out[0]


def _ref_seq(data_seq, h0, w_i2h, b_i2h, w_h2o, b_h2o):
    hp = jax.lax.Precision.HIGHEST

    def step(h, d):
        x = jnp.concatenate([d, h], axis=1)
        hidden = jnp.dot(x, w_i2h.T, precision=hp) + b_i2h
        output = jnp.dot(hidden, w_h2o.T, precision=hp) + b_h2o
        return hidden, (hidden, output)

    _, (hids, outs) = jax.lax.scan(step, h0, data_seq)
    return hids, outs


if __name__ == "__main__":
    # Sizes implied by the module: hidden_size = 20, batch_size = 10.
    batch_size = 10
    data_size = 64
    hidden_size = 20
    output_size = 10
    seq_len = 8

    key = jax.random.PRNGKey(0)
    k_data, k_h0, k_wi, k_bi, k_wo, k_bo = jax.random.split(key, 6)

    data_seq = jax.random.normal(k_data, (seq_len, batch_size, data_size),
                                 dtype=jnp.float32)
    h0 = jax.random.normal(k_h0, (batch_size, hidden_size), dtype=jnp.float32)

    # Deterministic PyTorch-Linear-style init: U(-1/sqrt(fan_in), 1/sqrt(fan_in)).
    in_sz = data_size + hidden_size
    bound_i = 1.0 / jnp.sqrt(float(in_sz))
    bound_o = 1.0 / jnp.sqrt(float(hidden_size))
    w_i2h = jax.random.uniform(k_wi, (hidden_size, in_sz), jnp.float32,
                               -bound_i, bound_i)
    b_i2h = jax.random.uniform(k_bi, (hidden_size,), jnp.float32,
                               -bound_i, bound_i)
    w_h2o = jax.random.uniform(k_wo, (output_size, hidden_size), jnp.float32,
                               -bound_o, bound_o)
    b_h2o = jax.random.uniform(k_bo, (output_size,), jnp.float32,
                               -bound_o, bound_o)

    # --- full-sequence recurrence folded into ONE pallas_call (f32) ---
    hid_seq, out_seq = rnn_forward_seq(data_seq, h0, w_i2h, b_i2h, w_h2o, b_h2o)
    jax.block_until_ready((hid_seq, out_seq))

    hid_ref, out_ref = _ref_seq(data_seq, h0, w_i2h, b_i2h, w_h2o, b_h2o)
    assert jnp.allclose(hid_seq, hid_ref, atol=1e-4, rtol=1e-4)
    assert jnp.allclose(out_seq, out_ref, atol=1e-4, rtol=1e-4)

    # --- single-step call == PyTorch module forward(data, last_hidden) ---
    last_hidden = jnp.zeros((batch_size, hidden_size), jnp.float32)
    hid1, out1 = rnn_forward(data_seq[0], last_hidden, w_i2h, b_i2h, w_h2o, b_h2o)
    hp = jax.lax.Precision.HIGHEST
    x_cat = jnp.concatenate([data_seq[0], last_hidden], axis=1)
    hid1_ref = jnp.dot(x_cat, w_i2h.T, precision=hp) + b_i2h
    out1_ref = jnp.dot(hid1_ref, w_h2o.T, precision=hp) + b_h2o
    assert jnp.allclose(hid1, hid1_ref, atol=1e-4, rtol=1e-4)
    assert jnp.allclose(out1, out1_ref, atol=1e-4, rtol=1e-4)

    # --- bf16 matmul operands (valid on v5e/v6e/v7x MXUs), f32 acc + biases ---
    # NOTE: the pre-fused bf16 weights compound rounding through the recurrence;
    # tolerances pass at T=8 but re-check for long sequences.
    hid_bf, out_bf = rnn_forward_seq(data_seq, h0, w_i2h, b_i2h, w_h2o, b_h2o,
                                     compute_dtype=jnp.bfloat16)
    jax.block_until_ready((hid_bf, out_bf))
    assert jnp.allclose(hid_bf, hid_ref, atol=5e-2, rtol=5e-2)
    assert jnp.allclose(out_bf, out_ref, atol=5e-2, rtol=5e-2)

    print("KERNEL_OK")
</pallas_src>

<mosaic_0001>
module attributes {stable_mosaic.version = 11 : i64} {
  func.func @kernel(%arg0: i32, %arg1: i32, %arg2: memref<8x16x128xf32, #tpu.memory_space<vmem>>, %arg3: memref<16x128xf32, #tpu.memory_space<vmem>>, %arg4: memref<256x256xf32, #tpu.memory_space<vmem>>, %arg5: memref<1x256xf32, #tpu.memory_space<vmem>>, %arg6: memref<8x16x256xf32, #tpu.memory_space<vmem>>, %arg7: memref<16x128xf32, #tpu.memory_space<vmem>>, %arg8: memref<16x256xf32, #tpu.memory_space<vmem>>) attributes {dimension_semantics = [#tpu.dimension_semantics<parallel>, #tpu.dimension_semantics<arbitrary>], iteration_bounds = array<i64: 1, 1>, scalar_prefetch = 0 : i64, scratch_operands = 2 : i64, tpu.core_type = #tpu.core_type<tc>, window_params = [{transform_indices = @transform_0, window_bounds = array<i64: 8, 16, 128>}, {transform_indices = @transform_1, window_bounds = array<i64: 16, 128>}, {pipeline_mode = #tpu.pipeline_mode<synchronous>, transform_indices = @transform_2, window_bounds = array<i64: 256, 256>}, {pipeline_mode = #tpu.pipeline_mode<synchronous>, transform_indices = @transform_3, window_bounds = array<i64: 1, 256>}, {transform_indices = @transform_4, window_bounds = array<i64: 8, 16, 256>}]} {
    %c0_i32 = arith.constant 0 : i32
    %0 = arith.cmpi eq, %arg1, %c0_i32 : i32
    %1 = arith.extui %0 : i1 to i32
    %c0_i32_0 = arith.constant 0 : i32
    %2 = arith.cmpi ne, %1, %c0_i32_0 : i32
    scf.if %2 {
      %c0_123 = arith.constant 0 : index
      %c0_124 = arith.constant 0 : index
      %133 = vector.load %arg3[%c0_123, %c0_124] : memref<16x128xf32, #tpu.memory_space<vmem>>, vector<16x128xf32>
      %c0_125 = arith.constant 0 : index
      %c0_126 = arith.constant 0 : index
      %134 = vector.load %arg7[%c0_125, %c0_126] : memref<16x128xf32, #tpu.memory_space<vmem>>, vector<16x128xf32>
      tpu.vector_store %arg7[%c0_125, %c0_126], %133 {strides = array<i32>} : memref<16x128xf32, #tpu.memory_space<vmem>>, vector<16x128xf32>,
    } else {
    }
    %c0 = arith.constant 0 : index
    %c0_1 = arith.constant 0 : index
    %3 = vector.load %arg7[%c0, %c0_1] : memref<16x128xf32, #tpu.memory_space<vmem>>, vector<16x128xf32>
    %c0_i32_2 = arith.constant 0 : i32
    %4 = arith.index_cast %c0_i32_2 : i32 to index
    %c0_3 = arith.constant 0 : index
    %c0_4 = arith.constant 0 : index
    %5 = vector.load %arg2[%4, %c0_3, %c0_4] : memref<8x16x128xf32, #tpu.memory_space<vmem>>, vector<1x16x128xf32>
    %6 = vector.shape_cast %5 : vector<1x16x128xf32> to vector<16x128xf32>
    %c0_5 = arith.constant 0 : index
    %c0_6 = arith.constant 0 : index
    %7 = vector.load %arg8[%c0_5, %c0_6] : memref<16x256xf32, #tpu.memory_space<vmem>>, vector<16x128xf32>
    tpu.vector_store %arg8[%c0_5, %c0_6], %6 {strides = array<i32>} : memref<16x256xf32, #tpu.memory_space<vmem>>, vector<16x128xf32>,
    %c0_7 = arith.constant 0 : index
    %c128 = arith.constant 128 : index
    %8 = vector.load %arg8[%c0_7, %c128] : memref<16x256xf32, #tpu.memory_space<vmem>>, vector<16x128xf32>
    tpu.vector_store %arg8[%c0_7, %c128], %3 {strides = array<i32>} : memref<16x256xf32, #tpu.memory_space<vmem>>, vector<16x128xf32>,
    %c0_8 = arith.constant 0 : index
    %c0_9 = arith.constant 0 : index
    %9 = vector.load %arg8[%c0_8, %c0_9] : memref<16x256xf32, #tpu.memory_space<vmem>>, vector<16x256xf32>
    %c0_10 = arith.constant 0 : index
    %c0_11 = arith.constant 0 : index
    %10 = vector.load %arg4[%c0_10, %c0_11] : memref<256x256xf32, #tpu.memory_space<vmem>>, vector<256x256xf32>
    %cst = arith.constant dense<0.000000e+00> : vector<16x256xf32>
    %11 = tpu.matmul %9, %10, %cst {dimension_numbers = #tpu.dot_dimension_numbers<[1], [0], [0], [1], [0, 0, 1, 1], [], []>} : vector<16x256xf32>, vector<256x256xf32>, vector<16x256xf32> -> vector<16x256xf32>
    %c0_12 = arith.constant 0 : index
    %c0_13 = arith.constant 0 : index
    %12 = vector.load %arg5[%c0_12, %c0_13] : memref<1x256xf32, #tpu.memory_space<vmem>>, vector<1x256xf32>
    %13 = vector.broadcast %12 : vector<1x256xf32> to vector<16x256xf32>
    %14 = arith.addf %11, %13 : vector<16x256xf32>
    %15 = arith.index_cast %c0_i32_2 : i32 to index
    %c0_14 = arith.constant 0 : index
    %c0_15 = arith.constant 0 : index
    %16 = vector.load %arg6[%15, %c0_14, %c0_15] : memref<8x16x256xf32, #tpu.memory_space<vmem>>, vector<1x16x256xf32>
    %17 = vector.shape_cast %16 : vector<1x16x256xf32> to vector<16x256xf32>
    %18 = vector.shape_cast %14 : vector<16x256xf32> to vector<1x16x256xf32>
    tpu.vector_store %arg6[%15, %c0_14, %c0_15], %18 {strides = array<i32>} : memref<8x16x256xf32, #tpu.memory_space<vmem>>, vector<1x16x256xf32>,
    %19 = vector.extract_strided_slice %14 {offsets = [0, 0], sizes = [16, 128], strides = [1, 1]} : vector<16x256xf32> to vector<16x128xf32>
    %c1_i32 = arith.constant 1 : i32
    %20 = arith.index_cast %c1_i32 : i32 to index
    %c0_16 = arith.constant 0 : index
    %c0_17 = arith.constant 0 : index
    %21 = vector.load %arg2[%20, %c0_16, %c0_17] : memref<8x16x128xf32, #tpu.memory_space<vmem>>, vector<1x16x128xf32>
    %22 = vector.shape_cast %21 : vector<1x16x128xf32> to vector<16x128xf32>
    %c0_18 = arith.constant 0 : index
    %c0_19 = arith.constant 0 : index
    %23 = vector.load %arg8[%c0_18, %c0_19] : memref<16x256xf32, #tpu.memory_space<vmem>>, vector<16x128xf32>
    tpu.vector_store %arg8[%c0_18, %c0_19], %22 {strides = array<i32>} : memref<16x256xf32, #tpu.memory_space<vmem>>, vector<16x128xf32>,
    %c0_20 = arith.constant 0 : index
    %c128_21 = arith.constant 128 : index
    %24 = vector.load %arg8[%c0_20, %c128_21] : memref<16x256xf32, #tpu.memory_space<vmem>>, vector<16x128xf32>
    tpu.vector_store %arg8[%c0_20, %c128_21], %19 {strides = array<i32>} : memref<16x256xf32, #tpu.memory_space<vmem>>, vector<16x128xf32>,
    %c0_22 = arith.constant 0 : index
    %c0_23 = arith.constant 0 : index
    %25 = vector.load %arg8[%c0_22, %c0_23] : memref<16x256xf32, #tpu.memory_space<vmem>>, vector<16x256xf32>
    %c0_24 = arith.constant 0 : index
    %c0_25 = arith.constant 0 : index
    %26 = vector.load %arg4[%c0_24, %c0_25] : memref<256x256xf32, #tpu.memory_space<vmem>>, vector<256x256xf32>
    %cst_26 = arith.constant dense<0.000000e+00> : vector<16x256xf32>
    %27 = tpu.matmul %25, %26, %cst_26 {dimension_numbers = #tpu.dot_dimension_numbers<[1], [0], [0], [1], [0, 0, 1, 1], [], []>} : vector<16x256xf32>, vector<256x256xf32>, vector<16x256xf32> -> vector<16x256xf32>
    %c0_27 = arith.constant 0 : index
    %c0_28 = arith.constant 0 : index
    %28 = vector.load %arg5[%c0_27, %c0_28] : memref<1x256xf32, #tpu.memory_space<vmem>>, vector<1x256xf32>
    %29 = vector.broadcast %28 : vector<1x256xf32> to vector<16x256xf32>
    %30 = arith.addf %27, %29 : vector<16x256xf32>
    %31 = arith.index_cast %c1_i32 : i32 to index
    %c0_29 = arith.constant 0 : index
    %c0_30 = arith.constant 0 : index
    %32 = vector.load %arg6[%31, %c0_29, %c0_30] : memref<8x16x256xf32, #tpu.memory_space<vmem>>, vector<1x16x256xf32>
    %33 = vector.shape_cast %32 : vector<1x16x256xf32> to vector<16x256xf32>
    %34 = vector.shape_cast %30 : vector<16x256xf32> to vector<1x16x256xf32>
    tpu.vector_store %arg6[%31, %c0_29, %c0_30], %34 {strides = array<i32>} : memref<8x16x256xf32, #tpu.memory_space<vmem>>, vector<1x16x256xf32>,
    %35 = vector.extract_strided_slice %30 {offsets = [0, 0], sizes = [16, 128], strides = [1, 1]} : vector<16x256xf32> to vector<16x128xf32>
    %c2_i32 = arith.constant 2 : i32
    %36 = arith.index_cast %c2_i32 : i32 to index
    %c0_31 = arith.constant 0 : index
    %c0_32 = arith.constant 0 : index
    %37 = vector.load %arg2[%36, %c0_31, %c0_32] : memref<8x16x128xf32, #tpu.memory_space<vmem>>, vector<1x16x128xf32>
    %38 = vector.shape_cast %37 : vector<1x16x128xf32> to vector<16x128xf32>
    %c0_33 = arith.constant 0 : index
    %c0_34 = arith.constant 0 : index
    %39 = vector.load %arg8[%c0_33, %c0_34] : memref<16x256xf32, #tpu.memory_space<vmem>>, vector<16x128xf32>
    tpu.vector_store %arg8[%c0_33, %c0_34], %38 {strides = array<i32>} : memref<16x256xf32, #tpu.memory_space<vmem>>, vector<16x128xf32>,
    %c0_35 = arith.constant 0 : index
    %c128_36 = arith.constant 128 : index
    %40 = vector.load %arg8[%c0_35, %c128_36] : memref<16x256xf32, #tpu.memory_space<vmem>>, vector<16x128xf32>
    tpu.vector_store %arg8[%c0_35, %c128_36], %35 {strides = array<i32>} : memref<16x256xf32, #tpu.memory_space<vmem>>, vector<16x128xf32>,
    %c0_37 = arith.constant 0 : index
    %c0_38 = arith.constant 0 : index
    %41 = vector.load %arg8[%c0_37, %c0_38] : memref<16x256xf32, #tpu.memory_space<vmem>>, vector<16x256xf32>
    %c0_39 = arith.constant 0 : index
    %c0_40 = arith.constant 0 : index
    %42 = vector.load %arg4[%c0_39, %c0_40] : memref<256x256xf32, #tpu.memory_space<vmem>>, vector<256x256xf32>
    %cst_41 = arith.constant dense<0.000000e+00> : vector<16x256xf32>
    %43 = tpu.matmul %41, %42, %cst_41 {dimension_numbers = #tpu.dot_dimension_numbers<[1], [0], [0], [1], [0, 0, 1, 1], [], []>} : vector<16x256xf32>, vector<256x256xf32>, vector<16x256xf32> -> vector<16x256xf32>
    %c0_42 = arith.constant 0 : index
    %c0_43 = arith.constant 0 : index
    %44 = vector.load %arg5[%c0_42, %c0_43] : memref<1x256xf32, #tpu.memory_space<vmem>>, vector<1x256xf32>
    %45 = vector.broadcast %44 : vector<1x256xf32> to vector<16x256xf32>
    %46 = arith.addf %43, %45 : vector<16x256xf32>
    %47 = arith.index_cast %c2_i32 : i32 to index
    %c0_44 = arith.constant 0 : index
    %c0_45 = arith.constant 0 : index
    %48 = vector.load %arg6[%47, %c0_44, %c0_45] : memref<8x16x256xf32, #tpu.memory_space<vmem>>, vector<1x16x256xf32>
    %49 = vector.shape_cast %48 : vector<1x16x256xf32> to vector<16x256xf32>
    %50 = vector.shape_cast %46 : vector<16x256xf32> to vector<1x16x256xf32>
    tpu.vector_store %arg6[%47, %c0_44, %c0_45], %50 {strides = array<i32>} : memref<8x16x256xf32, #tpu.memory_space<vmem>>, vector<1x16x256xf32>,
    %51 = vector.extract_strided_slice %46 {offsets = [0, 0], sizes = [16, 128], strides = [1, 1]} : vector<16x256xf32> to vector<16x128xf32>
    %c3_i32 = arith.constant 3 : i32
    %52 = arith.index_cast %c3_i32 : i32 to index
    %c0_46 = arith.constant 0 : index
    %c0_47 = arith.constant 0 : index
    %53 = vector.load %arg2[%52, %c0_46, %c0_47] : memref<8x16x128xf32, #tpu.memory_space<vmem>>, vector<1x16x128xf32>
    %54 = vector.shape_cast %53 : vector<1x16x128xf32> to vector<16x128xf32>
    %c0_48 = arith.constant 0 : index
    %c0_49 = arith.constant 0 : index
    %55 = vector.load %arg8[%c0_48, %c0_49] : memref<16x256xf32, #tpu.memory_space<vmem>>, vector<16x128xf32>
    tpu.vector_store %arg8[%c0_48, %c0_49], %54 {strides = array<i32>} : memref<16x256xf32, #tpu.memory_space<vmem>>, vector<16x128xf32>,
    %c0_50 = arith.constant 0 : index
    %c128_51 = arith.constant 128 : index
    %56 = vector.load %arg8[%c0_50, %c128_51] : memref<16x256xf32, #tpu.memory_space<vmem>>, vector<16x128xf32>
    tpu.vector_store %arg8[%c0_50, %c128_51], %51 {strides = array<i32>} : memref<16x256xf32, #tpu.memory_space<vmem>>, vector<16x128xf32>,
    %c0_52 = arith.constant 0 : index
    %c0_53 = arith.constant 0 : index
    %57 = vector.load %arg8[%c0_52, %c0_53] : memref<16x256xf32, #tpu.memory_space<vmem>>, vector<16x256xf32>
    %c0_54 = arith.constant 0 : index
    %c0_55 = arith.constant 0 : index
    %58 = vector.load %arg4[%c0_54, %c0_55] : memref<256x256xf32, #tpu.memory_space<vmem>>, vector<256x256xf32>
    %cst_56 = arith.constant dense<0.000000e+00> : vector<16x256xf32>
    %59 = tpu.matmul %57, %58, %cst_56 {dimension_numbers = #tpu.dot_dimension_numbers<[1], [0], [0], [1], [0, 0, 1, 1], [], []>} : vector<16x256xf32>, vector<256x256xf32>, vector<16x256xf32> -> vector<16x256xf32>
    %c0_57 = arith.constant 0 : index
    %c0_58 = arith.constant 0 : index
    %60 = vector.load %arg5[%c0_57, %c0_58] : memref<1x256xf32, #tpu.memory_space<vmem>>, vector<1x256xf32>
    %61 = vector.broadcast %60 : vector<1x256xf32> to vector<16x256xf32>
    %62 = arith.addf %59, %61 : vector<16x256xf32>
    %63 = arith.index_cast %c3_i32 : i32 to index
    %c0_59 = arith.constant 0 : index
    %c0_60 = arith.constant 0 : index
    %64 = vector.load %arg6[%63, %c0_59, %c0_60] : memref<8x16x256xf32, #tpu.memory_space<vmem>>, vector<1x16x256xf32>
    %65 = vector.shape_cast %64 : vector<1x16x256xf32> to vector<16x256xf32>
    %66 = vector.shape_cast %62 : vector<16x256xf32> to vector<1x16x256xf32>
    tpu.vector_store %arg6[%63, %c0_59, %c0_60], %66 {strides = array<i32>} : memref<8x16x256xf32, #tpu.memory_space<vmem>>, vector<1x16x256xf32>,
    %67 = vector.extract_strided_slice %62 {offsets = [0, 0], sizes = [16, 128], strides = [1, 1]} : vector<16x256xf32> to vector<16x128xf32>
    %c4_i32 = arith.constant 4 : i32
    %68 = arith.index_cast %c4_i32 : i32 to index
    %c0_61 = arith.constant 0 : index
    %c0_62 = arith.constant 0 : index
    %69 = vector.load %arg2[%68, %c0_61, %c0_62] : memref<8x16x128xf32, #tpu.memory_space<vmem>>, vector<1x16x128xf32>
    %70 = vector.shape_cast %69 : vector<1x16x128xf32> to vector<16x128xf32>
    %c0_63 = arith.constant 0 : index
    %c0_64 = arith.constant 0 : index
    %71 = vector.load %arg8[%c0_63, %c0_64] : memref<16x256xf32, #tpu.memory_space<vmem>>, vector<16x128xf32>
    tpu.vector_store %arg8[%c0_63, %c0_64], %70 {strides = array<i32>} : memref<16x256xf32, #tpu.memory_space<vmem>>, vector<16x128xf32>,
    %c0_65 = arith.constant 0 : index
    %c128_66 = arith.constant 128 : index
    %72 = vector.load %arg8[%c0_65, %c128_66] : memref<16x256xf32, #tpu.memory_space<vmem>>, vector<16x128xf32>
    tpu.vector_store %arg8[%c0_65, %c128_66], %67 {strides = array<i32>} : memref<16x256xf32, #tpu.memory_space<vmem>>, vector<16x128xf32>,
    %c0_67 = arith.constant 0 : index
    %c0_68 = arith.constant 0 : index
    %73 = vector.load %arg8[%c0_67, %c0_68] : memref<16x256xf32, #tpu.memory_space<vmem>>, vector<16x256xf32>
    %c0_69 = arith.constant 0 : index
    %c0_70 = arith.constant 0 : index
    %74 = vector.load %arg4[%c0_69, %c0_70] : memref<256x256xf32, #tpu.memory_space<vmem>>, vector<256x256xf32>
    %cst_71 = arith.constant dense<0.000000e+00> : vector<16x256xf32>
    %75 = tpu.matmul %73, %74, %cst_71 {dimension_numbers = #tpu.dot_dimension_numbers<[1], [0], [0], [1], [0, 0, 1, 1], [], []>} : vector<16x256xf32>, vector<256x256xf32>, vector<16x256xf32> -> vector<16x256xf32>
    %c0_72 = arith.constant 0 : index
    %c0_73 = arith.constant 0 : index
    %76 = vector.load %arg5[%c0_72, %c0_73] : memref<1x256xf32, #tpu.memory_space<vmem>>, vector<1x256xf32>
    %77 = vector.broadcast %76 : vector<1x256xf32> to vector<16x256xf32>
    %78 = arith.addf %75, %77 : vector<16x256xf32>
    %79 = arith.index_cast %c4_i32 : i32 to index
    %c0_74 = arith.constant 0 : index
    %c0_75 = arith.constant 0 : index
    %80 = vector.load %arg6[%79, %c0_74, %c0_75] : memref<8x16x256xf32, #tpu.memory_space<vmem>>, vector<1x16x256xf32>
    %81 = vector.shape_cast %80 : vector<1x16x256xf32> to vector<16x256xf32>
    %82 = vector.shape_cast %78 : vector<16x256xf32> to vector<1x16x256xf32>
    tpu.vector_store %arg6[%79, %c0_74, %c0_75], %82 {strides = array<i32>} : memref<8x16x256xf32, #tpu.memory_space<vmem>>, vector<1x16x256xf32>,
    %83 = vector.extract_strided_slice %78 {offsets = [0, 0], sizes = [16, 128], strides = [1, 1]} : vector<16x256xf32> to vector<16x128xf32>
    %c5_i32 = arith.constant 5 : i32
    %84 = arith.index_cast %c5_i32 : i32 to index
    %c0_76 = arith.constant 0 : index
    %c0_77 = arith.constant 0 : index
    %85 = vector.load %arg2[%84, %c0_76, %c0_77] : memref<8x16x128xf32, #tpu.memory_space<vmem>>, vector<1x16x128xf32>
    %86 = vector.shape_cast %85 : vector<1x16x128xf32> to vector<16x128xf32>
    %c0_78 = arith.constant 0 : index
    %c0_79 = arith.constant 0 : index
    %87 = vector.load %arg8[%c0_78, %c0_79] : memref<16x256xf32, #tpu.memory_space<vmem>>, vector<16x128xf32>
    tpu.vector_store %arg8[%c0_78, %c0_79], %86 {strides = array<i32>} : memref<16x256xf32, #tpu.memory_space<vmem>>, vector<16x128xf32>,
    %c0_80 = arith.constant 0 : index
    %c128_81 = arith.constant 128 : index
    %88 = vector.load %arg8[%c0_80, %c128_81] : memref<16x256xf32, #tpu.memory_space<vmem>>, vector<16x128xf32>
    tpu.vector_store %arg8[%c0_80, %c128_81], %83 {strides = array<i32>} : memref<16x256xf32, #tpu.memory_space<vmem>>, vector<16x128xf32>,
    %c0_82 = arith.constant 0 : index
    %c0_83 = arith.constant 0 : index
    %89 = vector.load %arg8[%c0_82, %c0_83] : memref<16x256xf32, #tpu.memory_space<vmem>>, vector<16x256xf32>
    %c0_84 = arith.constant 0 : index
    %c0_85 = arith.constant 0 : index
    %90 = vector.load %arg4[%c0_84, %c0_85] : memref<256x256xf32, #tpu.memory_space<vmem>>, vector<256x256xf32>
    %cst_86 = arith.constant dense<0.000000e+00> : vector<16x256xf32>
    %91 = tpu.matmul %89, %90, %cst_86 {dimension_numbers = #tpu.dot_dimension_numbers<[1], [0], [0], [1], [0, 0, 1, 1], [], []>} : vector<16x256xf32>, vector<256x256xf32>, vector<16x256xf32> -> vector<16x256xf32>
    %c0_87 = arith.constant 0 : index
    %c0_88 = arith.constant 0 : index
    %92 = vector.load %arg5[%c0_87, %c0_88] : memref<1x256xf32, #tpu.memory_space<vmem>>, vector<1x256xf32>
    %93 = vector.broadcast %92 : vector<1x256xf32> to vector<16x256xf32>
    %94 = arith.addf %91, %93 : vector<16x256xf32>
    %95 = arith.index_cast %c5_i32 : i32 to index
    %c0_89 = arith.constant 0 : index
    %c0_90 = arith.constant 0 : index
    %96 = vector.load %arg6[%95, %c0_89, %c0_90] : memref<8x16x256xf32, #tpu.memory_space<vmem>>, vector<1x16x256xf32>
    %97 = vector.shape_cast %96 : vector<1x16x256xf32> to vector<16x256xf32>
    %98 = vector.shape_cast %94 : vector<16x256xf32> to vector<1x16x256xf32>
    tpu.vector_store %arg6[%95, %c0_89, %c0_90], %98 {strides = array<i32>} : memref<8x16x256xf32, #tpu.memory_space<vmem>>, vector<1x16x256xf32>,
    %99 = vector.extract_strided_slice %94 {offsets = [0, 0], sizes = [16, 128], strides = [1, 1]} : vector<16x256xf32> to vector<16x128xf32>
    %c6_i32 = arith.constant 6 : i32
    %100 = arith.index_cast %c6_i32 : i32 to index
    %c0_91 = arith.constant 0 : index
    %c0_92 = arith.constant 0 : index
    %101 = vector.load %arg2[%100, %c0_91, %c0_92] : memref<8x16x128xf32, #tpu.memory_space<vmem>>, vector<1x16x128xf32>
    %102 = vector.shape_cast %101 : vector<1x16x128xf32> to vector<16x128xf32>
    %c0_93 = arith.constant 0 : index
    %c0_94 = arith.constant 0 : index
    %103 = vector.load %arg8[%c0_93, %c0_94] : memref<16x256xf32, #tpu.memory_space<vmem>>, vector<16x128xf32>
    tpu.vector_store %arg8[%c0_93, %c0_94], %102 {strides = array<i32>} : memref<16x256xf32, #tpu.memory_space<vmem>>, vector<16x128xf32>,
    %c0_95 = arith.constant 0 : index
    %c128_96 = arith.constant 128 : index
    %104 = vector.load %arg8[%c0_95, %c128_96] : memref<16x256xf32, #tpu.memory_space<vmem>>, vector<16x128xf32>
    tpu.vector_store %arg8[%c0_95, %c128_96], %99 {strides = array<i32>} : memref<16x256xf32, #tpu.memory_space<vmem>>, vector<16x128xf32>,
    %c0_97 = arith.constant 0 : index
    %c0_98 = arith.constant 0 : index
    %105 = vector.load %arg8[%c0_97, %c0_98] : memref<16x256xf32, #tpu.memory_space<vmem>>, vector<16x256xf32>
    %c0_99 = arith.constant 0 : index
    %c0_100 = arith.constant 0 : index
    %106 = vector.load %arg4[%c0_99, %c0_100] : memref<256x256xf32, #tpu.memory_space<vmem>>, vector<256x256xf32>
    %cst_101 = arith.constant dense<0.000000e+00> : vector<16x256xf32>
    %107 = tpu.matmul %105, %106, %cst_101 {dimension_numbers = #tpu.dot_dimension_numbers<[1], [0], [0], [1], [0, 0, 1, 1], [], []>} : vector<16x256xf32>, vector<256x256xf32>, vector<16x256xf32> -> vector<16x256xf32>
    %c0_102 = arith.constant 0 : index
    %c0_103 = arith.constant 0 : index
    %108 = vector.load %arg5[%c0_102, %c0_103] : memref<1x256xf32, #tpu.memory_space<vmem>>, vector<1x256xf32>
    %109 = vector.broadcast %108 : vector<1x256xf32> to vector<16x256xf32>
    %110 = arith.addf %107, %109 : vector<16x256xf32>
    %111 = arith.index_cast %c6_i32 : i32 to index
    %c0_104 = arith.constant 0 : index
    %c0_105 = arith.constant 0 : index
    %112 = vector.load %arg6[%111, %c0_104, %c0_105] : memref<8x16x256xf32, #tpu.memory_space<vmem>>, vector<1x16x256xf32>
    %113 = vector.shape_cast %112 : vector<1x16x256xf32> to vector<16x256xf32>
    %114 = vector.shape_cast %110 : vector<16x256xf32> to vector<1x16x256xf32>
    tpu.vector_store %arg6[%111, %c0_104, %c0_105], %114 {strides = array<i32>} : memref<8x16x256xf32, #tpu.memory_space<vmem>>, vector<1x16x256xf32>,
    %115 = vector.extract_strided_slice %110 {offsets = [0, 0], sizes = [16, 128], strides = [1, 1]} : vector<16x256xf32> to vector<16x128xf32>
    %c7_i32 = arith.constant 7 : i32
    %116 = arith.index_cast %c7_i32 : i32 to index
    %c0_106 = arith.constant 0 : index
    %c0_107 = arith.constant 0 : index
    %117 = vector.load %arg2[%116, %c0_106, %c0_107] : memref<8x16x128xf32, #tpu.memory_space<vmem>>, vector<1x16x128xf32>
    %118 = vector.shape_cast %117 : vector<1x16x128xf32> to vector<16x128xf32>
    %c0_108 = arith.constant 0 : index
    %c0_109 = arith.constant 0 : index
    %119 = vector.load %arg8[%c0_108, %c0_109] : memref<16x256xf32, #tpu.memory_space<vmem>>, vector<16x128xf32>
    tpu.vector_store %arg8[%c0_108, %c0_109], %118 {strides = array<i32>} : memref<16x256xf32, #tpu.memory_space<vmem>>, vector<16x128xf32>,
    %c0_110 = arith.constant 0 : index
    %c128_111 = arith.constant 128 : index
    %120 = vector.load %arg8[%c0_110, %c128_111] : memref<16x256xf32, #tpu.memory_space<vmem>>, vector<16x128xf32>
    tpu.vector_store %arg8[%c0_110, %c128_111], %115 {strides = array<i32>} : memref<16x256xf32, #tpu.memory_space<vmem>>, vector<16x128xf32>,
    %c0_112 = arith.constant 0 : index
    %c0_113 = arith.constant 0 : index
    %121 = vector.load %arg8[%c0_112, %c0_113] : memref<16x256xf32, #tpu.memory_space<vmem>>, vector<16x256xf32>
    %c0_114 = arith.constant 0 : index
    %c0_115 = arith.constant 0 : index
    %122 = vector.load %arg4[%c0_114, %c0_115] : memref<256x256xf32, #tpu.memory_space<vmem>>, vector<256x256xf32>
    %cst_116 = arith.constant dense<0.000000e+00> : vector<16x256xf32>
    %123 = tpu.matmul %121, %122, %cst_116 {dimension_numbers = #tpu.dot_dimension_numbers<[1], [0], [0], [1], [0, 0, 1, 1], [], []>} : vector<16x256xf32>, vector<256x256xf32>, vector<16x256xf32> -> vector<16x256xf32>
    %c0_117 = arith.constant 0 : index
    %c0_118 = arith.constant 0 : index
    %124 = vector.load %arg5[%c0_117, %c0_118] : memref<1x256xf32, #tpu.memory_space<vmem>>, vector<1x256xf32>
    %125 = vector.broadcast %124 : vector<1x256xf32> to vector<16x256xf32>
    %126 = arith.addf %123, %125 : vector<16x256xf32>
    %127 = arith.index_cast %c7_i32 : i32 to index
    %c0_119 = arith.constant 0 : index
    %c0_120 = arith.constant 0 : index
    %128 = vector.load %arg6[%127, %c0_119, %c0_120] : memref<8x16x256xf32, #tpu.memory_space<vmem>>, vector<1x16x256xf32>
    %129 = vector.shape_cast %128 : vector<1x16x256xf32> to vector<16x256xf32>
    %130 = vector.shape_cast %126 : vector<16x256xf32> to vector<1x16x256xf32>
    tpu.vector_store %arg6[%127, %c0_119, %c0_120], %130 {strides = array<i32>} : memref<8x16x256xf32, #tpu.memory_space<vmem>>, vector<1x16x256xf32>,
    %131 = vector.extract_strided_slice %126 {offsets = [0, 0], sizes = [16, 128], strides = [1, 1]} : vector<16x256xf32> to vector<16x128xf32>
    %c8_i32 = arith.constant 8 : i32
    %c0_121 = arith.constant 0 : index
    %c0_122 = arith.constant 0 : index
    %132 = vector.load %arg7[%c0_121, %c0_122] : memref<16x128xf32, #tpu.memory_space<vmem>>, vector<16x128xf32>
    tpu.vector_store %arg7[%c0_121, %c0_122], %131 {strides = array<i32>} : memref<16x128xf32, #tpu.memory_space<vmem>>, vector<16x128xf32>,
    return
  }
  func.func @transform_0(%arg0: i32, %arg1: i32) -> (i32, i32, i32) {
    %c0_i32 = arith.constant 0 : i32
    %c0_i32_0 = arith.constant 0 : i32
    return %arg1, %arg0, %c0_i32 : i32, i32, i32
  }
  func.func @transform_1(%arg0: i32, %arg1: i32) -> (i32, i32) {
    %c0_i32 = arith.constant 0 : i32
    %c0_i32_0 = arith.constant 0 : i32
    return %arg0, %c0_i32 : i32, i32
  }
  func.func @transform_2(%arg0: i32, %arg1: i32) -> (i32, i32) {
    %c0_i32 = arith.constant 0 : i32
    %c0_i32_0 = arith.constant 0 : i32
    %c0_i32_1 = arith.constant 0 : i32
    return %c0_i32, %c0_i32_0 : i32, i32
  }
  func.func @transform_3(%arg0: i32, %arg1: i32) -> (i32, i32) {
    %c0_i32 = arith.constant 0 : i32
    %c0_i32_0 = arith.constant 0 : i32
    %c0_i32_1 = arith.constant 0 : i32
    return %c0_i32, %c0_i32_0 : i32, i32
  }
  func.func @transform_4(%arg0: i32, %arg1: i32) -> (i32, i32, i32) {
    %c0_i32 = arith.constant 0 : i32
    %c0_i32_0 = arith.constant 0 : i32
    return %arg1, %arg0, %c0_i32 : i32, i32, i32
  }
}

</mosaic_0001>

<llo_original>
// kernel: tpu_custom_call.1
$region0: #{tpu_custom_call.1}
  #allocation0 [shape = 'u32[]', space=smem, size = 0x4, offset = 0x4, fixed_abs, tag = 'smem constant byte address 0x4 - core index']
  #allocation1 [shape = 'u32[144,128]{1,0:T(1,128)}', space=vmem, size = 0x12000, scoped, tag = 'internal scratch']
  #allocation2 [shape = 'f32[16,128]{1,0:T(8,128)}', space=vmem, size = 0x2000, scoped, tag = 'scratch operand']
  #allocation3 [shape = 'f32[16,256]{1,0:T(8,128)}', space=vmem, size = 0x4000, scoped, tag = 'scratch operand']
  %s0 = inlined_call_operand.hbm [shape: f32[8,16,128], index: 0, kind: input, shape index: {}]
  %s1 = inlined_call_operand.hbm [shape: f32[16,128], index: 1, kind: input, shape index: {}]
  %s2 = inlined_call_operand.hbm [shape: f32[256,256], index: 2, kind: input, shape index: {}]
  %s3 = inlined_call_operand.vmem [shape: f32[1,256], index: 3, kind: input, shape index: {}]
  %s4 = inlined_call_operand.hbm [shape: f32[8,16,256], index: 4, kind: output, shape index: {}]
  %s5 = sld [smem:[#allocation0]]
  $region42: #{tpu_custom_call.1} parent=0
    _
  %s7 = ssub.s32 1, %s5
  %s8 = scalar_select 0, %s7, %s5
  $region1: #{tpu_custom_call.1} parent=0
    #allocation4 [shape = 'u8[65536]{0}', space=vmem, size = 0x10000, scoped, tag = 'input window, operand 0, single buffered']
    #allocation5 [shape = 's32[1]{0}', space=sflag, size = 0x4, scoped, tag = 'scoped memory for tpu_custom_call.1']
    #allocation6 [shape = 's32[1]{0}', space=sflag, size = 0x4, scoped, tag = 'scoped memory for tpu_custom_call.1']
    #allocation7 [shape = 'u8[8192]{0}', space=vmem, size = 0x2000, scoped, tag = 'input window, operand 1, single buffered']
    #allocation8 [shape = 's32[1]{0}', space=sflag, size = 0x4, scoped, tag = 'scoped memory for tpu_custom_call.1']
    #allocation9 [shape = 'u8[262144]{0}', space=vmem, size = 0x40000, scoped, tag = 'input window, operand 2, single buffered']
    #allocation10 [shape = 'u8[131072]{0}', space=vmem, size = 0x20000, scoped, tag = 'output window, operand 0, single buffered']
    %9 = vsyncpa [#allocation5], 0
    %10 = vsyncpa [#allocation8], 0
    %11 = vsyncpa [#allocation6], 0
    // Predicated region
    $region2: #{tpu_custom_call.1} parent=1 // pred_check
      _
    $region3: #{tpu_custom_call.1} parent=1 // pred_check_branch
      %13 = sbr.rel (0) target = $region5
    $region4: #{tpu_custom_call.1} parent=1 // pred_region
      %s15 = ssub.s32 2048, 2048
      %16 = vsyncadd [#allocation5], %s15
      %s17 = sshll.u32 [#allocation4], 4
      %s18 = int_to_ptr.vmem [resolvable:$true] %s17
      %23 = dma.hbm_to_vmem [thread:$0]  %s0, 2048, %s18, [#allocation5], 128, 128, 8
    $region5: #{tpu_custom_call.1} parent=1 // pred_fallthru
      _
    // Predicated region
    $region6: #{tpu_custom_call.1} parent=1 // pred_check
      _
    $region7: #{tpu_custom_call.1} parent=1 // pred_check_branch
      %25 = sbr.rel (0) target = $region9
    $region8: #{tpu_custom_call.1} parent=1 // pred_region
      %s27 = ssub.s32 256, 256
      %28 = vsyncadd [#allocation8], %s27
      %s29 = sshll.u32 [#allocation7], 4
      %s30 = int_to_ptr.vmem [resolvable:$true] %s29
      %35 = dma.hbm_to_vmem [thread:$0]  %s1, 256, %s30, [#allocation8], 128, 128, 8
    $region9: #{tpu_custom_call.1} parent=1 // pred_fallthru
      _
    // Predicated region
    $region10: #{tpu_custom_call.1} parent=1 // pred_check
      _
    $region11: #{tpu_custom_call.1} parent=1 // pred_check_branch
      %37 = sbr.rel (0) target = $region13
    $region12: #{tpu_custom_call.1} parent=1 // pred_region
      %s39 = ssub.s32 8192, 8192
      %40 = vsyncadd [#allocation8], %s39
      %s41 = sshll.u32 [#allocation9], 4
      %s42 = int_to_ptr.vmem [resolvable:$true] %s41
      %47 = dma.hbm_to_vmem [thread:$0]  %s2, 8192, %s42, [#allocation8], 256, 256, 16
    $region13: #{tpu_custom_call.1} parent=1 // pred_fallthru
      _
    // Predicated region
    $region14: #{tpu_custom_call.1} parent=1 // pred_check
      _
    $region15: #{tpu_custom_call.1} parent=1 // pred_check_branch
      %49 = sbr.rel (0) target = $region17
    $region16: #{tpu_custom_call.1} parent=1 // pred_region
      _
    $region17: #{tpu_custom_call.1} parent=1 // pred_fallthru
      _
    // Predicated region
    $region18: #{tpu_custom_call.1} parent=1 // pred_check
      _
    $region19: #{tpu_custom_call.1} parent=1 // pred_check_branch
      %51 = sbr.rel (0) target = $region21
    $region20: #{tpu_custom_call.1} parent=1 // pred_region
      %52 = dma.done [#allocation5], 2048
    $region21: #{tpu_custom_call.1} parent=1 // pred_fallthru
      _
    // Predicated region
    $region22: #{tpu_custom_call.1} parent=1 // pred_check
      _
    $region23: #{tpu_custom_call.1} parent=1 // pred_check_branch
      %54 = sbr.rel (0) target = $region25
    $region24: #{tpu_custom_call.1} parent=1 // pred_region
      %55 = dma.done [#allocation8], 256
    $region25: #{tpu_custom_call.1} parent=1 // pred_fallthru
      _
    // Predicated region
    $region26: #{tpu_custom_call.1} parent=1 // pred_check
      _
    $region27: #{tpu_custom_call.1} parent=1 // pred_check_branch
      %57 = sbr.rel (0) target = $region29
    $region28: #{tpu_custom_call.1} parent=1 // pred_region
      %58 = dma.done [#allocation8], 8192
    $region29: #{tpu_custom_call.1} parent=1 // pred_fallthru
      _
    %p59 = scmp.eq.s32.totalorder 0, 0
    // Predicated region
    $region30: #{tpu_custom_call.1} parent=1 // pred_check
      %p60 = pneg %p59
    $region31: #{tpu_custom_call.1} parent=1 // pred_check_branch
      %62 = sbr.rel (%p60) target = $region33
    $region32: #{tpu_custom_call.1} parent=1 // pred_region
      %v63 = vld [vmem:[#allocation7] sm:$0xff]
      %v64 = vld [vmem:[#allocation7 + $0x8] sm:$0xff]
      %65 = vst [vmem:[#allocation2] sm:$0xff] %v63
      %66 = vst [vmem:[#allocation2 + $0x8] sm:$0xff] %v64
    $region33: #{tpu_custom_call.1} parent=1 // pred_fallthru
      _
    %v67 = vld [vmem:[#allocation2] sm:$0xff]
    %v68 = vld [vmem:[#allocation2 + $0x8] sm:$0xff]
    %v69 = vld [vmem:[#allocation4] sm:$0xff]
    %v70 = vld [vmem:[#allocation4 + $0x8] sm:$0xff]
    %71 = vst [vmem:[#allocation3] sm:$0xff] %v69
    %72 = vst [vmem:[#allocation3 + $0x10] sm:$0xff] %v70
    %73 = vst [vmem:[#allocation3 + $0x8] sm:$0xff] %v67
    %74 = vst [vmem:[#allocation3 + $0x18] sm:$0xff] %v68
    %v75 = vld [vmem:[#allocation3] sm:$0xff]
    %v76 = vld [vmem:[#allocation3 + $0x8] sm:$0xff]
    %v77 = vld [vmem:[#allocation3 + $0x10] sm:$0xff]
    %v78 = vld [vmem:[#allocation3 + $0x18] sm:$0xff]
    %v79 = vld [vmem:[#allocation9] sm:$0xff]
    %v80 = vld [vmem:[#allocation9 + $0x8] sm:$0xff]
    %v81 = vld [vmem:[#allocation9 + $0x10] sm:$0xff]
    %v82 = vld [vmem:[#allocation9 + $0x18] sm:$0xff]
    %v83 = vld [vmem:[#allocation9 + $0x20] sm:$0xff]
    %v84 = vld [vmem:[#allocation9 + $0x28] sm:$0xff]
    %v85 = vld [vmem:[#allocation9 + $0x30] sm:$0xff]
    %v86 = vld [vmem:[#allocation9 + $0x38] sm:$0xff]
    %v87 = vld [vmem:[#allocation9 + $0x40] sm:$0xff]
    %v88 = vld [vmem:[#allocation9 + $0x48] sm:$0xff]
    %v89 = vld [vmem:[#allocation9 + $0x50] sm:$0xff]
    %v90 = vld [vmem:[#allocation9 + $0x58] sm:$0xff]
    %v91 = vld [vmem:[#allocation9 + $0x60] sm:$0xff]
    %v92 = vld [vmem:[#allocation9 + $0x68] sm:$0xff]
    %v93 = vld [vmem:[#allocation9 + $0x70] sm:$0xff]
    %v94 = vld [vmem:[#allocation9 + $0x78] sm:$0xff]
    %v95 = vld [vmem:[#allocation9 + $0x80] sm:$0xff]
    %v96 = vld [vmem:[#allocation9 + $0x88] sm:$0xff]
    %v97 = vld [vmem:[#allocation9 + $0x90] sm:$0xff]
    %v98 = vld [vmem:[#allocation9 + $0x98] sm:$0xff]
    %v99 = vld [vmem:[#allocation9 + $0xa0] sm:$0xff]
    %v100 = vld [vmem:[#allocation9 + $0xa8] sm:$0xff]
    %v101 = vld [vmem:[#allocation9 + $0xb0] sm:$0xff]
    %v102 = vld [vmem:[#allocation9 + $0xb8] sm:$0xff]
    %v103 = vld [vmem:[#allocation9 + $0xc0] sm:$0xff]
    %v104 = vld [vmem:[#allocation9 + $0xc8] sm:$0xff]
    %v105 = vld [vmem:[#allocation9 + $0xd0] sm:$0xff]
    %v106 = vld [vmem:[#allocation9 + $0xd8] sm:$0xff]
    %v107 = vld [vmem:[#allocation9 + $0xe0] sm:$0xff]
    %v108 = vld [vmem:[#allocation9 + $0xe8] sm:$0xff]
    %v109 = vld [vmem:[#allocation9 + $0xf0] sm:$0xff]
    %v110 = vld [vmem:[#allocation9 + $0xf8] sm:$0xff]
    %v111 = vld [vmem:[#allocation9 + $0x100] sm:$0xff]
    %v112 = vld [vmem:[#allocation9 + $0x108] sm:$0xff]
    %v113 = vld [vmem:[#allocation9 + $0x110] sm:$0xff]
    %v114 = vld [vmem:[#allocation9 + $0x118] sm:$0xff]
    %v115 = vld [vmem:[#allocation9 + $0x120] sm:$0xff]
    %v116 = vld [vmem:[#allocation9 + $0x128] sm:$0xff]
    %v117 = vld [vmem:[#allocation9 + $0x130] sm:$0xff]
    %v118 = vld [vmem:[#allocation9 + $0x138] sm:$0xff]
    %v119 = vld [vmem:[#allocation9 + $0x140] sm:$0xff]
    %v120 = vld [vmem:[#allocation9 + $0x148] sm:$0xff]
    %v121 = vld [vmem:[#allocation9 + $0x150] sm:$0xff]
    %v122 = vld [vmem:[#allocation9 + $0x158] sm:$0xff]
    %v123 = vld [vmem:[#allocation9 + $0x160] sm:$0xff]
    %v124 = vld [vmem:[#allocation9 + $0x168] sm:$0xff]
    %v125 = vld [vmem:[#allocation9 + $0x170] sm:$0xff]
    %v126 = vld [vmem:[#allocation9 + $0x178] sm:$0xff]
    %v127 = vld [vmem:[#allocation9 + $0x180] sm:$0xff]
    %v128 = vld [vmem:[#allocation9 + $0x188] sm:$0xff]
    %v129 = vld [vmem:[#allocation9 + $0x190] sm:$0xff]
    %v130 = vld [vmem:[#allocation9 + $0x198] sm:$0xff]
    %v131 = vld [vmem:[#allocation9 + $0x1a0] sm:$0xff]
    %v132 = vld [vmem:[#allocation9 + $0x1a8] sm:$0xff]
    %v133 = vld [vmem:[#allocation9 + $0x1b0] sm:$0xff]
    %v134 = vld [vmem:[#allocation9 + $0x1b8] sm:$0xff]
    %v135 = vld [vmem:[#allocation9 + $0x1c0] sm:$0xff]
    %v136 = vld [vmem:[#allocation9 + $0x1c8] sm:$0xff]
    %v137 = vld [vmem:[#allocation9 + $0x1d0] sm:$0xff]
    %v138 = vld [vmem:[#allocation9 + $0x1d8] sm:$0xff]
    %v139 = vld [vmem:[#allocation9 + $0x1e0] sm:$0xff]
    %v140 = vld [vmem:[#allocation9 + $0x1e8] sm:$0xff]
    %v141 = vld [vmem:[#allocation9 + $0x1f0] sm:$0xff]
    %v142 = vld [vmem:[#allocation9 + $0x1f8] sm:$0xff]
    %v143 = vld [vmem:[%s3] sm:$0x3]
    %v145 = vlaneseq
    %v146 = vshrl.u32 %v145, 7
    %v147 = vsub.s32 0, %v146
    %v148 = vrot.slane %v143, %v147
    %v149 = vlaneseq
    %v150 = vshrl.u32 %v149, 7
    %v151 = vsub.s32 1, %v150
    %v152 = vrot.slane %v143, %v151
    %155 = vmatprep.subr.mxu0 %v110
    %156 = vmatpush1.msra.mxu0 %v109
    %157 = vmatprep.subr.mxu0 %v108
    %158 = vmatpush1.msra.mxu0 %v107
    %159 = vmatprep.subr.mxu0 %v106
    %160 = vmatpush1.msra.mxu0 %v105
    %161 = vmatprep.subr.mxu0 %v104
    %162 = vmatpush1.msra.mxu0 %v103
    %163 = vmatprep.subr.mxu0 %v102
    %164 = vmatpush1.msra.mxu0 %v101
    %165 = vmatprep.subr.mxu0 %v100
    %166 = vmatpush1.msra.mxu0 %v99
    %167 = vmatprep.subr.mxu0 %v98
    %168 = vmatpush1.msra.mxu0 %v97
    %169 = vmatprep.subr.mxu0 %v96
    %170 = vmatpush1.msra.mxu0 %v95
    %171 = vmatprep.subr.mxu0 %v94
    %172 = vmatpush1.msra.mxu0 %v93
    %173 = vmatprep.subr.mxu0 %v92
    %174 = vmatpush1.msra.mxu0 %v91
    %175 = vmatprep.subr.mxu0 %v90
    %176 = vmatpush1.msra.mxu0 %v89
    %177 = vmatprep.subr.mxu0 %v88
    %178 = vmatpush1.msra.mxu0 %v87
    %179 = vmatprep.subr.mxu0 %v86
    %180 = vmatpush1.msra.mxu0 %v85
    %181 = vmatprep.subr.mxu0 %v84
    %182 = vmatpush1.msra.mxu0 %v83
    %183 = vmatprep.subr.mxu0 %v82
    %184 = vmatpush1.msra.mxu0 %v81
    %185 = vmatprep.subr.mxu0 %v80
    %186 = vmatpush1.msra.mxu0 %v79
    %187 = vmatprep.subr.mxu0 %v142
    %188 = vmatpush2.msra.mxu0 %v141
    %189 = vmatprep.subr.mxu0 %v140
    %190 = vmatpush2.msra.mxu0 %v139
    %191 = vmatprep.subr.mxu0 %v138
    %192 = vmatpush2.msra.mxu0 %v137
    %193 = vmatprep.subr.mxu0 %v136
    %194 = vmatpush2.msra.mxu0 %v135
    %195 = vmatprep.subr.mxu0 %v134
    %196 = vmatpush2.msra.mxu0 %v133
    %197 = vmatprep.subr.mxu0 %v132
    %198 = vmatpush2.msra.mxu0 %v131
    %199 = vmatprep.subr.mxu0 %v130
    %200 = vmatpush2.msra.mxu0 %v129
    %201 = vmatprep.subr.mxu0 %v128
    %202 = vmatpush2.msra.mxu0 %v127
    %203 = vmatprep.subr.mxu0 %v126
    %204 = vmatpush2.msra.mxu0 %v125
    %205 = vmatprep.subr.mxu0 %v124
    %206 = vmatpush2.msra.mxu0 %v123
    %207 = vmatprep.subr.mxu0 %v122
    %208 = vmatpush2.msra.mxu0 %v121
    %209 = vmatprep.subr.mxu0 %v120
    %210 = vmatpush2.msra.mxu0 %v119
    %211 = vmatprep.subr.mxu0 %v118
    %212 = vmatpush2.msra.mxu0 %v117
    %213 = vmatprep.subr.mxu0 %v116
    %214 = vmatpush2.msra.mxu0 %v115
    %215 = vmatprep.subr.mxu0 %v114
    %216 = vmatpush2.msra.mxu0 %v113
    %217 = vmatprep.subr.mxu0 %v112
    %218 = vmatpush2.msra.mxu0 %v111
    %219 = vmatprep.mubr.f32.mxu0 %v76
    %220 = vmatmul.mubr.f32.gmra.mxu0 %v75
    %v221 = vpop.f32.mrf.mxu0
    %v222 = vadd.f32 %v148, %v221
    %v223 = vpop.f32.mrf.mxu0
    %v224 = vadd.f32 %v152, %v223
    %225 = vmatprep.mubr.f32.mxu0 %v78
    %226 = vmatmul.mubr.f32.gmra.mxu0 %v77
    %v227 = vpop.f32.mrf.mxu0
    %v228 = vadd.f32 %v148, %v227
    %v229 = vpop.f32.mrf.mxu0
    %v230 = vadd.f32 %v152, %v229
    %231 = vdwg.mxu0
    %232 = vst [vmem:[#allocation10] sm:$0xff] %v222
    %233 = vst [vmem:[#allocation10 + $0x8] sm:$0xff] %v224
    %234 = vst [vmem:[#allocation10 + $0x10] sm:$0xff] %v228
    %235 = vst [vmem:[#allocation10 + $0x18] sm:$0xff] %v230
    %s236 = scalar_lea.vmem [#allocation4], 16
    %v237 = vld [vmem:[%s236] sm:$0xff]
    %v238 = vld [vmem:[%s236 + $0x8] sm:$0xff]
    %239 = vst [vmem:[#allocation3] sm:$0xff] %v237
    %240 = vst [vmem:[#allocation3 + $0x10] sm:$0xff] %v238
    %241 = vst [vmem:[#allocation3 + $0x8] sm:$0xff] %v222
    %242 = vst [vmem:[#allocation3 + $0x18] sm:$0xff] %v228
    %v243 = vld [vmem:[#allocation3] sm:$0xff]
    %v244 = vld [vmem:[#allocation3 + $0x8] sm:$0xff]
    %v245 = vld [vmem:[#allocation3 + $0x10] sm:$0xff]
    %v246 = vld [vmem:[#allocation3 + $0x18] sm:$0xff]
    %v247 = vld [vmem:[#allocation9] sm:$0xff]
    %v248 = vld [vmem:[#allocation9 + $0x8] sm:$0xff]
    %v249 = vld [vmem:[#allocation9 + $0x10] sm:$0xff]
    %v250 = vld [vmem:[#allocation9 + $0x18] sm:$0xff]
    %v251 = vld [vmem:[#allocation9 + $0x20] sm:$0xff]
    %v252 = vld [vmem:[#allocation9 + $0x28] sm:$0xff]
    %v253 = vld [vmem:[#allocation9 + $0x30] sm:$0xff]
    %v254 = vld [vmem:[#allocation9 + $0x38] sm:$0xff]
    %v255 = vld [vmem:[#allocation9 + $0x40] sm:$0xff]
    %v256 = vld [vmem:[#allocation9 + $0x48] sm:$0xff]
    %v257 = vld [vmem:[#allocation9 + $0x50] sm:$0xff]
    %v258 = vld [vmem:[#allocation9 + $0x58] sm:$0xff]
    %v259 = vld [vmem:[#allocation9 + $0x60] sm:$0xff]
    %v260 = vld [vmem:[#allocation9 + $0x68] sm:$0xff]
    %v261 = vld [vmem:[#allocation9 + $0x70] sm:$0xff]
    %v262 = vld [vmem:[#allocation9 + $0x78] sm:$0xff]
    %v263 = vld [vmem:[#allocation9 + $0x80] sm:$0xff]
    %v264 = vld [vmem:[#allocation9 + $0x88] sm:$0xff]
    %v265 = vld [vmem:[#allocation9 + $0x90] sm:$0xff]
    %v266 = vld [vmem:[#allocation9 + $0x98] sm:$0xff]
    %v267 = vld [vmem:[#allocation9 + $0xa0] sm:$0xff]
    %v268 = vld [vmem:[#allocation9 + $0xa8] sm:$0xff]
    %v269 = vld [vmem:[#allocation9 + $0xb0] sm:$0xff]
    %v270 = vld [vmem:[#allocation9 + $0xb8] sm:$0xff]
    %v271 = vld [vmem:[#allocation9 + $0xc0] sm:$0xff]
    %v272 = vld [vmem:[#allocation9 + $0xc8] sm:$0xff]
    %v273 = vld [vmem:[#allocation9 + $0xd0] sm:$0xff]
    %v274 = vld [vmem:[#allocation9 + $0xd8] sm:$0xff]
    %v275 = vld [vmem:[#allocation9 + $0xe0] sm:$0xff]
    %v276 = vld [vmem:[#allocation9 + $0xe8] sm:$0xff]
    %v277 = vld [vmem:[#allocation9 + $0xf0] sm:$0xff]
    %v278 = vld [vmem:[#allocation9 + $0xf8] sm:$0xff]
    %v279 = vld [vmem:[#allocation9 + $0x100] sm:$0xff]
    %v280 = vld [vmem:[#allocation9 + $0x108] sm:$0xff]
    %v281 = vld [vmem:[#allocation9 + $0x110] sm:$0xff]
    %v282 = vld [vmem:[#allocation9 + $0x118] sm:$0xff]
    %v283 = vld [vmem:[#allocation9 + $0x120] sm:$0xff]
    %v284 = vld [vmem:[#allocation9 + $0x128] sm:$0xff]
    %v285 = vld [vmem:[#allocation9 + $0x130] sm:$0xff]
    %v286 = vld [vmem:[#allocation9 + $0x138] sm:$0xff]
    %v287 = vld [vmem:[#allocation9 + $0x140] sm:$0xff]
    %v288 = vld [vmem:[#allocation9 + $0x148] sm:$0xff]
    %v289 = vld [vmem:[#allocation9 + $0x150] sm:$0xff]
    %v290 = vld [vmem:[#allocation9 + $0x158] sm:$0xff]
    %v291 = vld [vmem:[#allocation9 + $0x160] sm:$0xff]
    %v292 = vld [vmem:[#allocation9 + $0x168] sm:$0xff]
    %v293 = vld [vmem:[#allocation9 + $0x170] sm:$0xff]
    %v294 = vld [vmem:[#allocation9 + $0x178] sm:$0xff]
    %v295 = vld [vmem:[#allocation9 + $0x180] sm:$0xff]
    %v296 = vld [vmem:[#allocation9 + $0x188] sm:$0xff]
    %v297 = vld [vmem:[#allocation9 + $0x190] sm:$0xff]
    %v298 = vld [vmem:[#allocation9 + $0x198] sm:$0xff]
    %v299 = vld [vmem:[#allocation9 + $0x1a0] sm:$0xff]
    %v300 = vld [vmem:[#allocation9 + $0x1a8] sm:$0xff]
    %v301 = vld [vmem:[#allocation9 + $0x1b0] sm:$0xff]
    %v302 = vld [vmem:[#allocation9 + $0x1b8] sm:$0xff]
    %v303 = vld [vmem:[#allocation9 + $0x1c0] sm:$0xff]
    %v304 = vld [vmem:[#allocation9 + $0x1c8] sm:$0xff]
    %v305 = vld [vmem:[#allocation9 + $0x1d0] sm:$0xff]
    %v306 = vld [vmem:[#allocation9 + $0x1d8] sm:$0xff]
    %v307 = vld [vmem:[#allocation9 + $0x1e0] sm:$0xff]
    %v308 = vld [vmem:[#allocation9 + $0x1e8] sm:$0xff]
    %v309 = vld [vmem:[#allocation9 + $0x1f0] sm:$0xff]
    %v310 = vld [vmem:[#allocation9 + $0x1f8] sm:$0xff]
    %v311 = vld [vmem:[%s3] sm:$0x3]
    %v313 = vlaneseq
    %v314 = vshrl.u32 %v313, 7
    %v315 = vsub.s32 0, %v314
    %v316 = vrot.slane %v311, %v315
    %v317 = vlaneseq
    %v318 = vshrl.u32 %v317, 7
    %v319 = vsub.s32 1, %v318
    %v320 = vrot.slane %v311, %v319
    %323 = vmatprep.subr.mxu0 %v278
    %324 = vmatpush1.msra.mxu0 %v277
    %325 = vmatprep.subr.mxu0 %v276
    %326 = vmatpush1.msra.mxu0 %v275
    %327 = vmatprep.subr.mxu0 %v274
    %328 = vmatpush1.msra.mxu0 %v273
    %329 = vmatprep.subr.mxu0 %v272
    %330 = vmatpush1.msra.mxu0 %v271
    %331 = vmatprep.subr.mxu0 %v270
    %332 = vmatpush1.msra.mxu0 %v269
    %333 = vmatprep.subr.mxu0 %v268
    %334 = vmatpush1.msra.mxu0 %v267
    %335 = vmatprep.subr.mxu0 %v266
    %336 = vmatpush1.msra.mxu0 %v265
    %337 = vmatprep.subr.mxu0 %v264
    %338 = vmatpush1.msra.mxu0 %v263
    %339 = vmatprep.subr.mxu0 %v262
    %340 = vmatpush1.msra.mxu0 %v261
    %341 = vmatprep.subr.mxu0 %v260
    %342 = vmatpush1.msra.mxu0 %v259
    %343 = vmatprep.subr.mxu0 %v258
    %344 = vmatpush1.msra.mxu0 %v257
    %345 = vmatprep.subr.mxu0 %v256
    %346 = vmatpush1.msra.mxu0 %v255
    %347 = vmatprep.subr.mxu0 %v254
    %348 = vmatpush1.msra.mxu0 %v253
    %349 = vmatprep.subr.mxu0 %v252
    %350 = vmatpush1.msra.mxu0 %v251
    %351 = vmatprep.subr.mxu0 %v250
    %352 = vmatpush1.msra.mxu0 %v249
    %353 = vmatprep.subr.mxu0 %v248
    %354 = vmatpush1.msra.mxu0 %v247
    %355 = vmatprep.subr.mxu0 %v310
    %356 = vmatpush2.msra.mxu0 %v309
    %357 = vmatprep.subr.mxu0 %v308
    %358 = vmatpush2.msra.mxu0 %v307
    %359 = vmatprep.subr.mxu0 %v306
    %360 = vmatpush2.msra.mxu0 %v305
    %361 = vmatprep.subr.mxu0 %v304
    %362 = vmatpush2.msra.mxu0 %v303
    %363 = vmatprep.subr.mxu0 %v302
    %364 = vmatpush2.msra.mxu0 %v301
    %365 = vmatprep.subr.mxu0 %v300
    %366 = vmatpush2.msra.mxu0 %v299
    %367 = vmatprep.subr.mxu0 %v298
    %368 = vmatpush2.msra.mxu0 %v297
    %369 = vmatprep.subr.mxu0 %v296
    %370 = vmatpush2.msra.mxu0 %v295
    %371 = vmatprep.subr.mxu0 %v294
    %372 = vmatpush2.msra.mxu0 %v293
    %373 = vmatprep.subr.mxu0 %v292
    %374 = vmatpush2.msra.mxu0 %v291
    %375 = vmatprep.subr.mxu0 %v290
    %376 = vmatpush2.msra.mxu0 %v289
    %377 = vmatprep.subr.mxu0 %v288
    %378 = vmatpush2.msra.mxu0 %v287
    %379 = vmatprep.subr.mxu0 %v286
    %380 = vmatpush2.msra.mxu0 %v285
    %381 = vmatprep.subr.mxu0 %v284
    %382 = vmatpush2.msra.mxu0 %v283
    %383 = vmatprep.subr.mxu0 %v282
    %384 = vmatpush2.msra.mxu0 %v281
    %385 = vmatprep.subr.mxu0 %v280
    %386 = vmatpush2.msra.mxu0 %v279
    %387 = vmatprep.mubr.f32.mxu0 %v244
    %388 = vmatmul.mubr.f32.gmra.mxu0 %v243
    %v389 = vpop.f32.mrf.mxu0
    %v390 = vadd.f32 %v316, %v389
    %v391 = vpop.f32.mrf.mxu0
    %v392 = vadd.f32 %v320, %v391
    %393 = vmatprep.mubr.f32.mxu0 %v246
    %394 = vmatmul.mubr.f32.gmra.mxu0 %v245
    %v395 = vpop.f32.mrf.mxu0
    %v396 = vadd.f32 %v316, %v395
    %v397 = vpop.f32.mrf.mxu0
    %v398 = vadd.f32 %v320, %v397
    %399 = vdwg.mxu0
    %s400 = scalar_lea.vmem [#allocation10], 32
    %401 = vst [vmem:[%s400] sm:$0xff] %v390
    %402 = vst [vmem:[%s400 + $0x8] sm:$0xff] %v392
    %403 = vst [vmem:[%s400 + $0x10] sm:$0xff] %v396
    %404 = vst [vmem:[%s400 + $0x18] sm:$0xff] %v398
    %s405 = scalar_lea.vmem [#allocation4], 32
    %v406 = vld [vmem:[%s405] sm:$0xff]
    %v407 = vld [vmem:[%s405 + $0x8] sm:$0xff]
    %408 = vst [vmem:[#allocation3] sm:$0xff] %v406
    %409 = vst [vmem:[#allocation3 + $0x10] sm:$0xff] %v407
    %410 = vst [vmem:[#allocation3 + $0x8] sm:$0xff] %v390
    %411 = vst [vmem:[#allocation3 + $0x18] sm:$0xff] %v396
    %v412 = vld [vmem:[#allocation3] sm:$0xff]
    %v413 = vld [vmem:[#allocation3 + $0x8] sm:$0xff]
    %v414 = vld [vmem:[#allocation3 + $0x10] sm:$0xff]
    %v415 = vld [vmem:[#allocation3 + $0x18] sm:$0xff]
    %v416 = vld [vmem:[#allocation9] sm:$0xff]
    %v417 = vld [vmem:[#allocation9 + $0x8] sm:$0xff]
    %v418 = vld [vmem:[#allocation9 + $0x10] sm:$0xff]
    %v419 = vld [vmem:[#allocation9 + $0x18] sm:$0xff]
    %v420 = vld [vmem:[#allocation9 + $0x20] sm:$0xff]
    %v421 = vld [vmem:[#allocation9 + $0x28] sm:$0xff]
    %v422 = vld [vmem:[#allocation9 + $0x30] sm:$0xff]
    %v423 = vld [vmem:[#allocation9 + $0x38] sm:$0xff]
    %v424 = vld [vmem:[#allocation9 + $0x40] sm:$0xff]
    %v425 = vld [vmem:[#allocation9 + $0x48] sm:$0xff]
    %v426 = vld [vmem:[#allocation9 + $0x50] sm:$0xff]
    %v427 = vld [vmem:[#allocation9 + $0x58] sm:$0xff]
    %v428 = vld [vmem:[#allocation9 + $0x60] sm:$0xff]
    %v429 = vld [vmem:[#allocation9 + $0x68] sm:$0xff]
    %v430 = vld [vmem:[#allocation9 + $0x70] sm:$0xff]
    %v431 = vld [vmem:[#allocation9 + $0x78] sm:$0xff]
    %v432 = vld [vmem:[#allocation9 + $0x80] sm:$0xff]
    %v433 = vld [vmem:[#allocation9 + $0x88] sm:$0xff]
    %v434 = vld [vmem:[#allocation9 + $0x90] sm:$0xff]
    %v435 = vld [vmem:[#allocation9 + $0x98] sm:$0xff]
    %v436 = vld [vmem:[#allocation9 + $0xa0] sm:$0xff]
    %v437 = vld [vmem:[#allocation9 + $0xa8] sm:$0xff]
    %v438 = vld [vmem:[#allocation9 + $0xb0] sm:$0xff]
    %v439 = vld [vmem:[#allocation9 + $0xb8] sm:$0xff]
    %v440 = vld [vmem:[#allocation9 + $0xc0] sm:$0xff]
    %v441 = vld [vmem:[#allocation9 + $0xc8] sm:$0xff]
    %v442 = vld [vmem:[#allocation9 + $0xd0] sm:$0xff]
    %v443 = vld [vmem:[#allocation9 + $0xd8] sm:$0xff]
    %v444 = vld [vmem:[#allocation9 + $0xe0] sm:$0xff]
    %v445 = vld [vmem:[#allocation9 + $0xe8] sm:$0xff]
    %v446 = vld [vmem:[#allocation9 + $0xf0] sm:$0xff]
    %v447 = vld [vmem:[#allocation9 + $0xf8] sm:$0xff]
    %v448 = vld [vmem:[#allocation9 + $0x100] sm:$0xff]
    %v449 = vld [vmem:[#allocation9 + $0x108] sm:$0xff]
    %v450 = vld [vmem:[#allocation9 + $0x110] sm:$0xff]
    %v451 = vld [vmem:[#allocation9 + $0x118] sm:$0xff]
    %v452 = vld [vmem:[#allocation9 + $0x120] sm:$0xff]
    %v453 = vld [vmem:[#allocation9 + $0x128] sm:$0xff]
    %v454 = vld [vmem:[#allocation9 + $0x130] sm:$0xff]
    %v455 = vld [vmem:[#allocation9 + $0x138] sm:$0xff]
    %v456 = vld [vmem:[#allocation9 + $0x140] sm:$0xff]
    %v457 = vld [vmem:[#allocation9 + $0x148] sm:$0xff]
    %v458 = vld [vmem:[#allocation9 + $0x150] sm:$0xff]
    %v459 = vld [vmem:[#allocation9 + $0x158] sm:$0xff]
    %v460 = vld [vmem:[#allocation9 + $0x160] sm:$0xff]
    %v461 = vld [vmem:[#allocation9 + $0x168] sm:$0xff]
    %v462 = vld [vmem:[#allocation9 + $0x170] sm:$0xff]
    %v463 = vld [vmem:[#allocation9 + $0x178] sm:$0xff]
    %v464 = vld [vmem:[#allocation9 + $0x180] sm:$0xff]
    %v465 = vld [vmem:[#allocation9 + $0x188] sm:$0xff]
    %v466 = vld [vmem:[#allocation9 + $0x190] sm:$0xff]
    %v467 = vld [vmem:[#allocation9 + $0x198] sm:$0xff]
    %v468 = vld [vmem:[#allocation9 + $0x1a0] sm:$0xff]
    %v469 = vld [vmem:[#allocation9 + $0x1a8] sm:$0xff]
    %v470 = vld [vmem:[#allocation9 + $0x1b0] sm:$0xff]
    %v471 = vld [vmem:[#allocation9 + $0x1b8] sm:$0xff]
    %v472 = vld [vmem:[#allocation9 + $0x1c0] sm:$0xff]
    %v473 = vld [vmem:[#allocation9 + $0x1c8] sm:$0xff]
    %v474 = vld [vmem:[#allocation9 + $0x1d0] sm:$0xff]
    %v475 = vld [vmem:[#allocation9 + $0x1d8] sm:$0xff]
    %v476 = vld [vmem:[#allocation9 + $0x1e0] sm:$0xff]
    %v477 = vld [vmem:[#allocation9 + $0x1e8] sm:$0xff]
    %v478 = vld [vmem:[#allocation9 + $0x1f0] sm:$0xff]
    %v479 = vld [vmem:[#allocation9 + $0x1f8] sm:$0xff]
    %v480 = vld [vmem:[%s3] sm:$0x3]
    %v482 = vlaneseq
    %v483 = vshrl.u32 %v482, 7
    %v484 = vsub.s32 0, %v483
    %v485 = vrot.slane %v480, %v484
    %v486 = vlaneseq
    %v487 = vshrl.u32 %v486, 7
    %v488 = vsub.s32 1, %v487
    %v489 = vrot.slane %v480, %v488
    %492 = vmatprep.subr.mxu0 %v447
    %493 = vmatpush1.msra.mxu0 %v446
    %494 = vmatprep.subr.mxu0 %v445
    %495 = vmatpush1.msra.mxu0 %v444
    %496 = vmatprep.subr.mxu0 %v443
    %497 = vmatpush1.msra.mxu0 %v442
    %498 = vmatprep.subr.mxu0 %v441
    %499 = vmatpush1.msra.mxu0 %v440
    %500 = vmatprep.subr.mxu0 %v439
    %501 = vmatpush1.msra.mxu0 %v438
    %502 = vmatprep.subr.mxu0 %v437
    %503 = vmatpush1.msra.mxu0 %v436
    %504 = vmatprep.subr.mxu0 %v435
    %505 = vmatpush1.msra.mxu0 %v434
    %506 = vmatprep.subr.mxu0 %v433
    %507 = vmatpush1.msra.mxu0 %v432
    %508 = vmatprep.subr.mxu0 %v431
    %509 = vmatpush1.msra.mxu0 %v430
    %510 = vmatprep.subr.mxu0 %v429
    %511 = vmatpush1.msra.mxu0 %v428
    %512 = vmatprep.subr.mxu0 %v427
    %513 = vmatpush1.msra.mxu0 %v426
    %514 = vmatprep.subr.mxu0 %v425
    %515 = vmatpush1.msra.mxu0 %v424
    %516 = vmatprep.subr.mxu0 %v423
    %517 = vmatpush1.msra.mxu0 %v422
    %518 = vmatprep.subr.mxu0 %v421
    %519 = vmatpush1.msra.mxu0 %v420
    %520 = vmatprep.subr.mxu0 %v419
    %521 = vmatpush1.msra.mxu0 %v418
    %522 = vmatprep.subr.mxu0 %v417
    %523 = vmatpush1.msra.mxu0 %v416
    %524 = vmatprep.subr.mxu0 %v479
    %525 = vmatpush2.msra.mxu0 %v478
    %526 = vmatprep.subr.mxu0 %v477
    %527 = vmatpush2.msra.mxu0 %v476
    %528 = vmatprep.subr.mxu0 %v475
    %529 = vmatpush2.msra.mxu0 %v474
    %530 = vmatprep.subr.mxu0 %v473
    %531 = vmatpush2.msra.mxu0 %v472
    %532 = vmatprep.subr.mxu0 %v471
    %533 = vmatpush2.msra.mxu0 %v470
    %534 = vmatprep.subr.mxu0 %v469
    %535 = vmatpush2.msra.mxu0 %v468
    %536 = vmatprep.subr.mxu0 %v467
    %537 = vmatpush2.msra.mxu0 %v466
    %538 = vmatprep.subr.mxu0 %v465
    %539 = vmatpush2.msra.mxu0 %v464
    %540 = vmatprep.subr.mxu0 %v463
    %541 = vmatpush2.msra.mxu0 %v462
    %542 = vmatprep.subr.mxu0 %v461
    %543 = vmatpush2.msra.mxu0 %v460
    %544 = vmatprep.subr.mxu0 %v459
    %545 = vmatpush2.msra.mxu0 %v458
    %546 = vmatprep.subr.mxu0 %v457
    %547 = vmatpush2.msra.mxu0 %v456
    %548 = vmatprep.subr.mxu0 %v455
    %549 = vmatpush2.msra.mxu0 %v454
    %550 = vmatprep.subr.mxu0 %v453
    %551 = vmatpush2.msra.mxu0 %v452
    %552 = vmatprep.subr.mxu0 %v451
    %553 = vmatpush2.msra.mxu0 %v450
    %554 = vmatprep.subr.mxu0 %v449
    %555 = vmatpush2.msra.mxu0 %v448
    %556 = vmatprep.mubr.f32.mxu0 %v413
    %557 = vmatmul.mubr.f32.gmra.mxu0 %v412
    %v558 = vpop.f32.mrf.mxu0
    %v559 = vadd.f32 %v485, %v558
    %v560 = vpop.f32.mrf.mxu0
    %v561 = vadd.f32 %v489, %v560
    %562 = vmatprep.mubr.f32.mxu0 %v415
    %563 = vmatmul.mubr.f32.gmra.mxu0 %v414
    %v564 = vpop.f32.mrf.mxu0
    %v565 = vadd.f32 %v485, %v564
    %v566 = vpop.f32.mrf.mxu0
    %v567 = vadd.f32 %v489, %v566
    %568 = vdwg.mxu0
    %s569 = scalar_lea.vmem [#allocation10], 64
    %570 = vst [vmem:[%s569] sm:$0xff] %v559
    %571 = vst [vmem:[%s569 + $0x8] sm:$0xff] %v561
    %572 = vst [vmem:[%s569 + $0x10] sm:$0xff] %v565
    %573 = vst [vmem:[%s569 + $0x18] sm:$0xff] %v567
    %s574 = scalar_lea.vmem [#allocation4], 48
    %v575 = vld [vmem:[%s574] sm:$0xff]
    %v576 = vld [vmem:[%s574 + $0x8] sm:$0xff]
    %577 = vst [vmem:[#allocation3] sm:$0xff] %v575
    %578 = vst [vmem:[#allocation3 + $0x10] sm:$0xff] %v576
    %579 = vst [vmem:[#allocation3 + $0x8] sm:$0xff] %v559
    %580 = vst [vmem:[#allocation3 + $0x18] sm:$0xff] %v565
    %v581 = vld [vmem:[#allocation3] sm:$0xff]
    %v582 = vld [vmem:[#allocation3 + $0x8] sm:$0xff]
    %v583 = vld [vmem:[#allocation3 + $0x10] sm:$0xff]
    %v584 = vld [vmem:[#allocation3 + $0x18] sm:$0xff]
    %v585 = vld [vmem:[#allocation9] sm:$0xff]
    %v586 = vld [vmem:[#allocation9 + $0x8] sm:$0xff]
    %v587 = vld [vmem:[#allocation9 + $0x10] sm:$0xff]
    %v588 = vld [vmem:[#allocation9 + $0x18] sm:$0xff]
    %v589 = vld [vmem:[#allocation9 + $0x20] sm:$0xff]
    %v590 = vld [vmem:[#allocation9 + $0x28] sm:$0xff]
    %v591 = vld [vmem:[#allocation9 + $0x30] sm:$0xff]
    %v592 = vld [vmem:[#allocation9 + $0x38] sm:$0xff]
    %v593 = vld [vmem:[#allocation9 + $0x40] sm:$0xff]
    %v594 = vld [vmem:[#allocation9 + $0x48] sm:$0xff]
    %v595 = vld [vmem:[#allocation9 + $0x50] sm:$0xff]
    %v596 = vld [vmem:[#allocation9 + $0x58] sm:$0xff]
    %v597 = vld [vmem:[#allocation9 + $0x60] sm:$0xff]
    %v598 = vld [vmem:[#allocation9 + $0x68] sm:$0xff]
    %v599 = vld [vmem:[#allocation9 + $0x70] sm:$0xff]
    %v600 = vld [vmem:[#allocation9 + $0x78] sm:$0xff]
    %v601 = vld [vmem:[#allocation9 + $0x80] sm:$0xff]
    %v602 = vld [vmem:[#allocation9 + $0x88] sm:$0xff]
    %v603 = vld [vmem:[#allocation9 + $0x90] sm:$0xff]
    %v604 = vld [vmem:[#allocation9 + $0x98] sm:$0xff]
    %v605 = vld [vmem:[#allocation9 + $0xa0] sm:$0xff]
    %v606 = vld [vmem:[#allocation9 + $0xa8] sm:$0xff]
    %v607 = vld [vmem:[#allocation9 + $0xb0] sm:$0xff]
    %v608 = vld [vmem:[#allocation9 + $0xb8] sm:$0xff]
    %v609 = vld [vmem:[#allocation9 + $0xc0] sm:$0xff]
    %v610 = vld [vmem:[#allocation9 + $0xc8] sm:$0xff]
    %v611 = vld [vmem:[#allocation9 + $0xd0] sm:$0xff]
    %v612 = vld [vmem:[#allocation9 + $0xd8] sm:$0xff]
    %v613 = vld [vmem:[#allocation9 + $0xe0] sm:$0xff]
    %v614 = vld [vmem:[#allocation9 + $0xe8] sm:$0xff]
    %v615 = vld [vmem:[#allocation9 + $0xf0] sm:$0xff]
    %v616 = vld [vmem:[#allocation9 + $0xf8] sm:$0xff]
    %v617 = vld [vmem:[#allocation9 + $0x100] sm:$0xff]
    %v618 = vld [vmem:[#allocation9 + $0x108] sm:$0xff]
    %v619 = vld [vmem:[#allocation9 + $0x110] sm:$0xff]
    %v620 = vld [vmem:[#allocation9 + $0x118] sm:$0xff]
    %v621 = vld [vmem:[#allocation9 + $0x120] sm:$0xff]
    %v622 = vld [vmem:[#allocation9 + $0x128] sm:$0xff]
    %v623 = vld [vmem:[#allocation9 + $0x130] sm:$0xff]
    %v624 = vld [vmem:[#allocation9 + $0x138] sm:$0xff]
    %v625 = vld [vmem:[#allocation9 + $0x140] sm:$0xff]
    %v626 = vld [vmem:[#allocation9 + $0x148] sm:$0xff]
    %v627 = vld [vmem:[#allocation9 + $0x150] sm:$0xff]
    %v628 = vld [vmem:[#allocation9 + $0x158] sm:$0xff]
    %v629 = vld [vmem:[#allocation9 + $0x160] sm:$0xff]
    %v630 = vld [vmem:[#allocation9 + $0x168] sm:$0xff]
    %v631 = vld [vmem:[#allocation9 + $0x170] sm:$0xff]
    %v632 = vld [vmem:[#allocation9 + $0x178] sm:$0xff]
    %v633 = vld [vmem:[#allocation9 + $0x180] sm:$0xff]
    %v634 = vld [vmem:[#allocation9 + $0x188] sm:$0xff]
    %v635 = vld [vmem:[#allocation9 + $0x190] sm:$0xff]
    %v636 = vld [vmem:[#allocation9 + $0x198] sm:$0xff]
    %v637 = vld [vmem:[#allocation9 + $0x1a0] sm:$0xff]
    %v638 = vld [vmem:[#allocation9 + $0x1a8] sm:$0xff]
    %v639 = vld [vmem:[#allocation9 + $0x1b0] sm:$0xff]
    %v640 = vld [vmem:[#allocation9 + $0x1b8] sm:$0xff]
    %v641 = vld [vmem:[#allocation9 + $0x1c0] sm:$0xff]
    %v642 = vld [vmem:[#allocation9 + $0x1c8] sm:$0xff]
    %v643 = vld [vmem:[#allocation9 + $0x1d0] sm:$0xff]
    %v644 = vld [vmem:[#allocation9 + $0x1d8] sm:$0xff]
    %v645 = vld [vmem:[#allocation9 + $0x1e0] sm:$0xff]
    %v646 = vld [vmem:[#allocation9 + $0x1e8] sm:$0xff]
    %v647 = vld [vmem:[#allocation9 + $0x1f0] sm:$0xff]
    %v648 = vld [vmem:[#allocation9 + $0x1f8] sm:$0xff]
    %v649 = vld [vmem:[%s3] sm:$0x3]
    %v651 = vlaneseq
    %v652 = vshrl.u32 %v651, 7
    %v653 = vsub.s32 0, %v652
    %v654 = vrot.slane %v649, %v653
    %v655 = vlaneseq
    %v656 = vshrl.u32 %v655, 7
    %v657 = vsub.s32 1, %v656
    %v658 = vrot.slane %v649, %v657
    %661 = vmatprep.subr.mxu0 %v616
    %662 = vmatpush1.msra.mxu0 %v615
    %663 = vmatprep.subr.mxu0 %v614
    %664 = vmatpush1.msra.mxu0 %v613
    %665 = vmatprep.subr.mxu0 %v612
    %666 = vmatpush1.msra.mxu0 %v611
    %667 = vmatprep.subr.mxu0 %v610
    %668 = vmatpush1.msra.mxu0 %v609
    %669 = vmatprep.subr.mxu0 %v608
    %670 = vmatpush1.msra.mxu0 %v607
    %671 = vmatprep.subr.mxu0 %v606
    %672 = vmatpush1.msra.mxu0 %v605
    %673 = vmatprep.subr.mxu0 %v604
    %674 = vmatpush1.msra.mxu0 %v603
    %675 = vmatprep.subr.mxu0 %v602
    %676 = vmatpush1.msra.mxu0 %v601
    %677 = vmatprep.subr.mxu0 %v600
    %678 = vmatpush1.msra.mxu0 %v599
    %679 = vmatprep.subr.mxu0 %v598
    %680 = vmatpush1.msra.mxu0 %v597
    %681 = vmatprep.subr.mxu0 %v596
    %682 = vmatpush1.msra.mxu0 %v595
    %683 = vmatprep.subr.mxu0 %v594
    %684 = vmatpush1.msra.mxu0 %v593
    %685 = vmatprep.subr.mxu0 %v592
    %686 = vmatpush1.msra.mxu0 %v591
    %687 = vmatprep.subr.mxu0 %v590
    %688 = vmatpush1.msra.mxu0 %v589
    %689 = vmatprep.subr.mxu0 %v588
    %690 = vmatpush1.msra.mxu0 %v587
    %691 = vmatprep.subr.mxu0 %v586
    %692 = vmatpush1.msra.mxu0 %v585
    %693 = vmatprep.subr.mxu0 %v648
    %694 = vmatpush2.msra.mxu0 %v647
    %695 = vmatprep.subr.mxu0 %v646
    %696 = vmatpush2.msra.mxu0 %v645
    %697 = vmatprep.subr.mxu0 %v644
    %698 = vmatpush2.msra.mxu0 %v643
    %699 = vmatprep.subr.mxu0 %v642
    %700 = vmatpush2.msra.mxu0 %v641
    %701 = vmatprep.subr.mxu0 %v640
    %702 = vmatpush2.msra.mxu0 %v639
    %703 = vmatprep.subr.mxu0 %v638
    %704 = vmatpush2.msra.mxu0 %v637
    %705 = vmatprep.subr.mxu0 %v636
    %706 = vmatpush2.msra.mxu0 %v635
    %707 = vmatprep.subr.mxu0 %v634
    %708 = vmatpush2.msra.mxu0 %v633
    %709 = vmatprep.subr.mxu0 %v632
    %710 = vmatpush2.msra.mxu0 %v631
    %711 = vmatprep.subr.mxu0 %v630
    %712 = vmatpush2.msra.mxu0 %v629
    %713 = vmatprep.subr.mxu0 %v628
    %714 = vmatpush2.msra.mxu0 %v627
    %715 = vmatprep.subr.mxu0 %v626
    %716 = vmatpush2.msra.mxu0 %v625
    %717 = vmatprep.subr.mxu0 %v624
    %718 = vmatpush2.msra.mxu0 %v623
    %719 = vmatprep.subr.mxu0 %v622
    %720 = vmatpush2.msra.mxu0 %v621
    %721 = vmatprep.subr.mxu0 %v620
    %722 = vmatpush2.msra.mxu0 %v619
    %723 = vmatprep.subr.mxu0 %v618
    %724 = vmatpush2.msra.mxu0 %v617
    %725 = vmatprep.mubr.f32.mxu0 %v582
    %726 = vmatmul.mubr.f32.gmra.mxu0 %v581
    %v727 = vpop.f32.mrf.mxu0
    %v728 = vadd.f32 %v654, %v727
    %v729 = vpop.f32.mrf.mxu0
    %v730 = vadd.f32 %v658, %v729
    %731 = vmatprep.mubr.f32.mxu0 %v584
    %732 = vmatmul.mubr.f32.gmra.mxu0 %v583
    %v733 = vpop.f32.mrf.mxu0
    %v734 = vadd.f32 %v654, %v733
    %v735 = vpop.f32.mrf.mxu0
    %v736 = vadd.f32 %v658, %v735
    %737 = vdwg.mxu0
    %s738 = scalar_lea.vmem [#allocation10], 96
    %739 = vst [vmem:[%s738] sm:$0xff] %v728
    %740 = vst [vmem:[%s738 + $0x8] sm:$0xff] %v730
    %741 = vst [vmem:[%s738 + $0x10] sm:$0xff] %v734
    %742 = vst [vmem:[%s738 + $0x18] sm:$0xff] %v736
    %s743 = scalar_lea.vmem [#allocation4], 64
    %v744 = vld [vmem:[%s743] sm:$0xff]
    %v745 = vld [vmem:[%s743 + $0x8] sm:$0xff]
    %746 = vst [vmem:[#allocation3] sm:$0xff] %v744
    %747 = vst [vmem:[#allocation3 + $0x10] sm:$0xff] %v745
    %748 = vst [vmem:[#allocation3 + $0x8] sm:$0xff] %v728
    %749 = vst [vmem:[#allocation3 + $0x18] sm:$0xff] %v734
    %v750 = vld [vmem:[#allocation3] sm:$0xff]
    %v751 = vld [vmem:[#allocation3 + $0x8] sm:$0xff]
    %v752 = vld [vmem:[#allocation3 + $0x10] sm:$0xff]
    %v753 = vld [vmem:[#allocation3 + $0x18] sm:$0xff]
    %v754 = vld [vmem:[#allocation9] sm:$0xff]
    %v755 = vld [vmem:[#allocation9 + $0x8] sm:$0xff]
    %v756 = vld [vmem:[#allocation9 + $0x10] sm:$0xff]
    %v757 = vld [vmem:[#allocation9 + $0x18] sm:$0xff]
    %v758 = vld [vmem:[#allocation9 + $0x20] sm:$0xff]
    %v759 = vld [vmem:[#allocation9 + $0x28] sm:$0xff]
    %v760 = vld [vmem:[#allocation9 + $0x30] sm:$0xff]
    %v761 = vld [vmem:[#allocation9 + $0x38] sm:$0xff]
    %v762 = vld [vmem:[#allocation9 + $0x40] sm:$0xff]
    %v763 = vld [vmem:[#allocation9 + $0x48] sm:$0xff]
    %v764 = vld [vmem:[#allocation9 + $0x50] sm:$0xff]
    %v765 = vld [vmem:[#allocation9 + $0x58] sm:$0xff]
    %v766 = vld [vmem:[#allocation9 + $0x60] sm:$0xff]
    %v767 = vld [vmem:[#allocation9 + $0x68] sm:$0xff]
    %v768 = vld [vmem:[#allocation9 + $0x70] sm:$0xff]
    %v769 = vld [vmem:[#allocation9 + $0x78] sm:$0xff]
    %v770 = vld [vmem:[#allocation9 + $0x80] sm:$0xff]
    %v771 = vld [vmem:[#allocation9 + $0x88] sm:$0xff]
    %v772 = vld [vmem:[#allocation9 + $0x90] sm:$0xff]
    %v773 = vld [vmem:[#allocation9 + $0x98] sm:$0xff]
    %v774 = vld [vmem:[#allocation9 + $0xa0] sm:$0xff]
    %v775 = vld [vmem:[#allocation9 + $0xa8] sm:$0xff]
    %v776 = vld [vmem:[#allocation9 + $0xb0] sm:$0xff]
    %v777 = vld [vmem:[#allocation9 + $0xb8] sm:$0xff]
    %v778 = vld [vmem:[#allocation9 + $0xc0] sm:$0xff]
    %v779 = vld [vmem:[#allocation9 + $0xc8] sm:$0xff]
    %v780 = vld [vmem:[#allocation9 + $0xd0] sm:$0xff]
    %v781 = vld [vmem:[#allocation9 + $0xd8] sm:$0xff]
    %v782 = vld [vmem:[#allocation9 + $0xe0] sm:$0xff]
    %v783 = vld [vmem:[#allocation9 + $0xe8] sm:$0xff]
    %v784 = vld [vmem:[#allocation9 + $0xf0] sm:$0xff]
    %v785 = vld [vmem:[#allocation9 + $0xf8] sm:$0xff]
    %v786 = vld [vmem:[#allocation9 + $0x100] sm:$0xff]
    %v787 = vld [vmem:[#allocation9 + $0x108] sm:$0xff]
    %v788 = vld [vmem:[#allocation9 + $0x110] sm:$0xff]
    %v789 = vld [vmem:[#allocation9 + $0x118] sm:$0xff]
    %v790 = vld [vmem:[#allocation9 + $0x120] sm:$0xff]
    %v791 = vld [vmem:[#allocation9 + $0x128] sm:$0xff]
    %v792 = vld [vmem:[#allocation9 + $0x130] sm:$0xff]
    %v793 = vld [vmem:[#allocation9 + $0x138] sm:$0xff]
    %v794 = vld [vmem:[#allocation9 + $0x140] sm:$0xff]
    %v795 = vld [vmem:[#allocation9 + $0x148] sm:$0xff]
    %v796 = vld [vmem:[#allocation9 + $0x150] sm:$0xff]
    %v797 = vld [vmem:[#allocation9 + $0x158] sm:$0xff]
    %v798 = vld [vmem:[#allocation9 + $0x160] sm:$0xff]
    %v799 = vld [vmem:[#allocation9 + $0x168] sm:$0xff]
    %v800 = vld [vmem:[#allocation9 + $0x170] sm:$0xff]
    %v801 = vld [vmem:[#allocation9 + $0x178] sm:$0xff]
    %v802 = vld [vmem:[#allocation9 + $0x180] sm:$0xff]
    %v803 = vld [vmem:[#allocation9 + $0x188] sm:$0xff]
    %v804 = vld [vmem:[#allocation9 + $0x190] sm:$0xff]
    %v805 = vld [vmem:[#allocation9 + $0x198] sm:$0xff]
    %v806 = vld [vmem:[#allocation9 + $0x1a0] sm:$0xff]
    %v807 = vld [vmem:[#allocation9 + $0x1a8] sm:$0xff]
    %v808 = vld [vmem:[#allocation9 + $0x1b0] sm:$0xff]
    %v809 = vld [vmem:[#allocation9 + $0x1b8] sm:$0xff]
    %v810 = vld [vmem:[#allocation9 + $0x1c0] sm:$0xff]
    %v811 = vld [vmem:[#allocation9 + $0x1c8] sm:$0xff]
    %v812 = vld [vmem:[#allocation9 + $0x1d0] sm:$0xff]
    %v813 = vld [vmem:[#allocation9 + $0x1d8] sm:$0xff]
    %v814 = vld [vmem:[#allocation9 + $0x1e0] sm:$0xff]
    %v815 = vld [vmem:[#allocation9 + $0x1e8] sm:$0xff]
    %v816 = vld [vmem:[#allocation9 + $0x1f0] sm:$0xff]
    %v817 = vld [vmem:[#allocation9 + $0x1f8] sm:$0xff]
    %v818 = vld [vmem:[%s3] sm:$0x3]
    %v820 = vlaneseq
    %v821 = vshrl.u32 %v820, 7
    %v822 = vsub.s32 0, %v821
    %v823 = vrot.slane %v818, %v822
    %v824 = vlaneseq
    %v825 = vshrl.u32 %v824, 7
    %v826 = vsub.s32 1, %v825
    %v827 = vrot.slane %v818, %v826
    %830 = vmatprep.subr.mxu0 %v785
    %831 = vmatpush1.msra.mxu0 %v784
    %832 = vmatprep.subr.mxu0 %v783
    %833 = vmatpush1.msra.mxu0 %v782
    %834 = vmatprep.subr.mxu0 %v781
    %835 = vmatpush1.msra.mxu0 %v780
    %836 = vmatprep.subr.mxu0 %v779
    %837 = vmatpush1.msra.mxu0 %v778
    %838 = vmatprep.subr.mxu0 %v777
    %839 = vmatpush1.msra.mxu0 %v776
    %840 = vmatprep.subr.mxu0 %v775
    %841 = vmatpush1.msra.mxu0 %v774
    %842 = vmatprep.subr.mxu0 %v773
    %843 = vmatpush1.msra.mxu0 %v772
    %844 = vmatprep.subr.mxu0 %v771
    %845 = vmatpush1.msra.mxu0 %v770
    %846 = vmatprep.subr.mxu0 %v769
    %847 = vmatpush1.msra.mxu0 %v768
    %848 = vmatprep.subr.mxu0 %v767
    %849 = vmatpush1.msra.mxu0 %v766
    %850 = vmatprep.subr.mxu0 %v765
    %851 = vmatpush1.msra.mxu0 %v764
    %852 = vmatprep.subr.mxu0 %v763
    %853 = vmatpush1.msra.mxu0 %v762
    %854 = vmatprep.subr.mxu0 %v761
    %855 = vmatpush1.msra.mxu0 %v760
    %856 = vmatprep.subr.mxu0 %v759
    %857 = vmatpush1.msra.mxu0 %v758
    %858 = vmatprep.subr.mxu0 %v757
    %859 = vmatpush1.msra.mxu0 %v756
    %860 = vmatprep.subr.mxu0 %v755
    %861 = vmatpush1.msra.mxu0 %v754
    %862 = vmatprep.subr.mxu0 %v817
    %863 = vmatpush2.msra.mxu0 %v816
    %864 = vmatprep.subr.mxu0 %v815
    %865 = vmatpush2.msra.mxu0 %v814
    %866 = vmatprep.subr.mxu0 %v813
    %867 = vmatpush2.msra.mxu0 %v812
    %868 = vmatprep.subr.mxu0 %v811
    %869 = vmatpush2.msra.mxu0 %v810
    %870 = vmatprep.subr.mxu0 %v809
    %871 = vmatpush2.msra.mxu0 %v808
    %872 = vmatprep.subr.mxu0 %v807
    %873 = vmatpush2.msra.mxu0 %v806
    %874 = vmatprep.subr.mxu0 %v805
    %875 = vmatpush2.msra.mxu0 %v804
    %876 = vmatprep.subr.mxu0 %v803
    %877 = vmatpush2.msra.mxu0 %v802
    %878 = vmatprep.subr.mxu0 %v801
    %879 = vmatpush2.msra.mxu0 %v800
    %880 = vmatprep.subr.mxu0 %v799
    %881 = vmatpush2.msra.mxu0 %v798
    %882 = vmatprep.subr.mxu0 %v797
    %883 = vmatpush2.msra.mxu0 %v796
    %884 = vmatprep.subr.mxu0 %v795
    %885 = vmatpush2.msra.mxu0 %v794
    %886 = vmatprep.subr.mxu0 %v793
    %887 = vmatpush2.msra.mxu0 %v792
    %888 = vmatprep.subr.mxu0 %v791
    %889 = vmatpush2.msra.mxu0 %v790
    %890 = vmatprep.subr.mxu0 %v789
    %891 = vmatpush2.msra.mxu0 %v788
    %892 = vmatprep.subr.mxu0 %v787
    %893 = vmatpush2.msra.mxu0 %v786
    %894 = vmatprep.mubr.f32.mxu0 %v751
    %895 = vmatmul.mubr.f32.gmra.mxu0 %v750
    %v896 = vpop.f32.mrf.mxu0
    %v897 = vadd.f32 %v823, %v896
    %v898 = vpop.f32.mrf.mxu0
    %v899 = vadd.f32 %v827, %v898
    %900 = vmatprep.mubr.f32.mxu0 %v753
    %901 = vmatmul.mubr.f32.gmra.mxu0 %v752
    %v902 = vpop.f32.mrf.mxu0
    %v903 = vadd.f32 %v823, %v902
    %v904 = vpop.f32.mrf.mxu0
    %v905 = vadd.f32 %v827, %v904
    %906 = vdwg.mxu0
    %s907 = scalar_lea.vmem [#allocation10], 128
    %908 = vst [vmem:[%s907] sm:$0xff] %v897
    %909 = vst [vmem:[%s907 + $0x8] sm:$0xff] %v899
    %910 = vst [vmem:[%s907 + $0x10] sm:$0xff] %v903
    %911 = vst [vmem:[%s907 + $0x18] sm:$0xff] %v905
    %s912 = scalar_lea.vmem [#allocation4], 80
    %v913 = vld [vmem:[%s912] sm:$0xff]
    %v914 = vld [vmem:[%s912 + $0x8] sm:$0xff]
    %915 = vst [vmem:[#allocation3] sm:$0xff] %v913
    %916 = vst [vmem:[#allocation3 + $0x10] sm:$0xff] %v914
    %917 = vst [vmem:[#allocation3 + $0x8] sm:$0xff] %v897
    %918 = vst [vmem:[#allocation3 + $0x18] sm:$0xff] %v903
    %v919 = vld [vmem:[#allocation3] sm:$0xff]
    %v920 = vld [vmem:[#allocation3 + $0x8] sm:$0xff]
    %v921 = vld [vmem:[#allocation3 + $0x10] sm:$0xff]
    %v922 = vld [vmem:[#allocation3 + $0x18] sm:$0xff]
    %v923 = vld [vmem:[#allocation9] sm:$0xff]
    %v924 = vld [vmem:[#allocation9 + $0x8] sm:$0xff]
    %v925 = vld [vmem:[#allocation9 + $0x10] sm:$0xff]
    %v926 = vld [vmem:[#allocation9 + $0x18] sm:$0xff]
    %v927 = vld [vmem:[#allocation9 + $0x20] sm:$0xff]
    %v928 = vld [vmem:[#allocation9 + $0x28] sm:$0xff]
    %v929 = vld [vmem:[#allocation9 + $0x30] sm:$0xff]
    %v930 = vld [vmem:[#allocation9 + $0x38] sm:$0xff]
    %v931 = vld [vmem:[#allocation9 + $0x40] sm:$0xff]
    %v932 = vld [vmem:[#allocation9 + $0x48] sm:$0xff]
    %v933 = vld [vmem:[#allocation9 + $0x50] sm:$0xff]
    %v934 = vld [vmem:[#allocation9 + $0x58] sm:$0xff]
    %v935 = vld [vmem:[#allocation9 + $0x60] sm:$0xff]
    %v936 = vld [vmem:[#allocation9 + $0x68] sm:$0xff]
    %v937 = vld [vmem:[#allocation9 + $0x70] sm:$0xff]
    %v938 = vld [vmem:[#allocation9 + $0x78] sm:$0xff]
    %v939 = vld [vmem:[#allocation9 + $0x80] sm:$0xff]
    %v940 = vld [vmem:[#allocation9 + $0x88] sm:$0xff]
    %v941 = vld [vmem:[#allocation9 + $0x90] sm:$0xff]
    %v942 = vld [vmem:[#allocation9 + $0x98] sm:$0xff]
    %v943 = vld [vmem:[#allocation9 + $0xa0] sm:$0xff]
    %v944 = vld [vmem:[#allocation9 + $0xa8] sm:$0xff]
    %v945 = vld [vmem:[#allocation9 + $0xb0] sm:$0xff]
    %v946 = vld [vmem:[#allocation9 + $0xb8] sm:$0xff]
    %v947 = vld [vmem:[#allocation9 + $0xc0] sm:$0xff]
    %v948 = vld [vmem:[#allocation9 + $0xc8] sm:$0xff]
    %v949 = vld [vmem:[#allocation9 + $0xd0] sm:$0xff]
    %v950 = vld [vmem:[#allocation9 + $0xd8] sm:$0xff]
    %v951 = vld [vmem:[#allocation9 + $0xe0] sm:$0xff]
    %v952 = vld [vmem:[#allocation9 + $0xe8] sm:$0xff]
    %v953 = vld [vmem:[#allocation9 + $0xf0] sm:$0xff]
    %v954 = vld [vmem:[#allocation9 + $0xf8] sm:$0xff]
    %v955 = vld [vmem:[#allocation9 + $0x100] sm:$0xff]
    %v956 = vld [vmem:[#allocation9 + $0x108] sm:$0xff]
    %v957 = vld [vmem:[#allocation9 + $0x110] sm:$0xff]
    %v958 = vld [vmem:[#allocation9 + $0x118] sm:$0xff]
    %v959 = vld [vmem:[#allocation9 + $0x120] sm:$0xff]
    %v960 = vld [vmem:[#allocation9 + $0x128] sm:$0xff]
    %v961 = vld [vmem:[#allocation9 + $0x130] sm:$0xff]
    %v962 = vld [vmem:[#allocation9 + $0x138] sm:$0xff]
    %v963 = vld [vmem:[#allocation9 + $0x140] sm:$0xff]
    %v964 = vld [vmem:[#allocation9 + $0x148] sm:$0xff]
    %v965 = vld [vmem:[#allocation9 + $0x150] sm:$0xff]
    %v966 = vld [vmem:[#allocation9 + $0x158] sm:$0xff]
    %v967 = vld [vmem:[#allocation9 + $0x160] sm:$0xff]
    %v968 = vld [vmem:[#allocation9 + $0x168] sm:$0xff]
    %v969 = vld [vmem:[#allocation9 + $0x170] sm:$0xff]
    %v970 = vld [vmem:[#allocation9 + $0x178] sm:$0xff]
    %v971 = vld [vmem:[#allocation9 + $0x180] sm:$0xff]
    %v972 = vld [vmem:[#allocation9 + $0x188] sm:$0xff]
    %v973 = vld [vmem:[#allocation9 + $0x190] sm:$0xff]
    %v974 = vld [vmem:[#allocation9 + $0x198] sm:$0xff]
    %v975 = vld [vmem:[#allocation9 + $0x1a0] sm:$0xff]
    %v976 = vld [vmem:[#allocation9 + $0x1a8] sm:$0xff]
    %v977 = vld [vmem:[#allocation9 + $0x1b0] sm:$0xff]
    %v978 = vld [vmem:[#allocation9 + $0x1b8] sm:$0xff]
    %v979 = vld [vmem:[#allocation9 + $0x1c0] sm:$0xff]
    %v980 = vld [vmem:[#allocation9 + $0x1c8] sm:$0xff]
    %v981 = vld [vmem:[#allocation9 + $0x1d0] sm:$0xff]
    %v982 = vld [vmem:[#allocation9 + $0x1d8] sm:$0xff]
    %v983 = vld [vmem:[#allocation9 + $0x1e0] sm:$0xff]
    %v984 = vld [vmem:[#allocation9 + $0x1e8] sm:$0xff]
    %v985 = vld [vmem:[#allocation9 + $0x1f0] sm:$0xff]
    %v986 = vld [vmem:[#allocation9 + $0x1f8] sm:$0xff]
    %v987 = vld [vmem:[%s3] sm:$0x3]
    %v989 = vlaneseq
    %v990 = vshrl.u32 %v989, 7
    %v991 = vsub.s32 0, %v990
    %v992 = vrot.slane %v987, %v991
    %v993 = vlaneseq
    %v994 = vshrl.u32 %v993, 7
    %v995 = vsub.s32 1, %v994
    %v996 = vrot.slane %v987, %v995
    %999 = vmatprep.subr.mxu0 %v954
    %1000 = vmatpush1.msra.mxu0 %v953
    %1001 = vmatprep.subr.mxu0 %v952
    %1002 = vmatpush1.msra.mxu0 %v951
    %1003 = vmatprep.subr.mxu0 %v950
    %1004 = vmatpush1.msra.mxu0 %v949
    %1005 = vmatprep.subr.mxu0 %v948
    %1006 = vmatpush1.msra.mxu0 %v947
    %1007 = vmatprep.subr.mxu0 %v946
    %1008 = vmatpush1.msra.mxu0 %v945
    %1009 = vmatprep.subr.mxu0 %v944
    %1010 = vmatpush1.msra.mxu0 %v943
    %1011 = vmatprep.subr.mxu0 %v942
    %1012 = vmatpush1.msra.mxu0 %v941
    %1013 = vmatprep.subr.mxu0 %v940
    %1014 = vmatpush1.msra.mxu0 %v939
    %1015 = vmatprep.subr.mxu0 %v938
    %1016 = vmatpush1.msra.mxu0 %v937
    %1017 = vmatprep.subr.mxu0 %v936
    %1018 = vmatpush1.msra.mxu0 %v935
    %1019 = vmatprep.subr.mxu0 %v934
    %1020 = vmatpush1.msra.mxu0 %v933
    %1021 = vmatprep.subr.mxu0 %v932
    %1022 = vmatpush1.msra.mxu0 %v931
    %1023 = vmatprep.subr.mxu0 %v930
    %1024 = vmatpush1.msra.mxu0 %v929
    %1025 = vmatprep.subr.mxu0 %v928
    %1026 = vmatpush1.msra.mxu0 %v927
    %1027 = vmatprep.subr.mxu0 %v926
    %1028 = vmatpush1.msra.mxu0 %v925
    %1029 = vmatprep.subr.mxu0 %v924
    %1030 = vmatpush1.msra.mxu0 %v923
    %1031 = vmatprep.subr.mxu0 %v986
    %1032 = vmatpush2.msra.mxu0 %v985
    %1033 = vmatprep.subr.mxu0 %v984
    %1034 = vmatpush2.msra.mxu0 %v983
    %1035 = vmatprep.subr.mxu0 %v982
    %1036 = vmatpush2.msra.mxu0 %v981
    %1037 = vmatprep.subr.mxu0 %v980
    %1038 = vmatpush2.msra.mxu0 %v979
    %1039 = vmatprep.subr.mxu0 %v978
    %1040 = vmatpush2.msra.mxu0 %v977
    %1041 = vmatprep.subr.mxu0 %v976
    %1042 = vmatpush2.msra.mxu0 %v975
    %1043 = vmatprep.subr.mxu0 %v974
    %1044 = vmatpush2.msra.mxu0 %v973
    %1045 = vmatprep.subr.mxu0 %v972
    %1046 = vmatpush2.msra.mxu0 %v971
    %1047 = vmatprep.subr.mxu0 %v970
    %1048 = vmatpush2.msra.mxu0 %v969
    %1049 = vmatprep.subr.mxu0 %v968
    %1050 = vmatpush2.msra.mxu0 %v967
    %1051 = vmatprep.subr.mxu0 %v966
    %1052 = vmatpush2.msra.mxu0 %v965
    %1053 = vmatprep.subr.mxu0 %v964
    %1054 = vmatpush2.msra.mxu0 %v963
    %1055 = vmatprep.subr.mxu0 %v962
    %1056 = vmatpush2.msra.mxu0 %v961
    %1057 = vmatprep.subr.mxu0 %v960
    %1058 = vmatpush2.msra.mxu0 %v959
    %1059 = vmatprep.subr.mxu0 %v958
    %1060 = vmatpush2.msra.mxu0 %v957
    %1061 = vmatprep.subr.mxu0 %v956
    %1062 = vmatpush2.msra.mxu0 %v955
    %1063 = vmatprep.mubr.f32.mxu0 %v920
    %1064 = vmatmul.mubr.f32.gmra.mxu0 %v919
    %v1065 = vpop.f32.mrf.mxu0
    %v1066 = vadd.f32 %v992, %v1065
    %v1067 = vpop.f32.mrf.mxu0
    %v1068 = vadd.f32 %v996, %v1067
    %1069 = vmatprep.mubr.f32.mxu0 %v922
    %1070 = vmatmul.mubr.f32.gmra.mxu0 %v921
    %v1071 = vpop.f32.mrf.mxu0
    %v1072 = vadd.f32 %v992, %v1071
    %v1073 = vpop.f32.mrf.mxu0
    %v1074 = vadd.f32 %v996, %v1073
    %1075 = vdwg.mxu0
    %s1076 = scalar_lea.vmem [#allocation10], 160
    %1077 = vst [vmem:[%s1076] sm:$0xff] %v1066
    %1078 = vst [vmem:[%s1076 + $0x8] sm:$0xff] %v1068
    %1079 = vst [vmem:[%s1076 + $0x10] sm:$0xff] %v1072
    %1080 = vst [vmem:[%s1076 + $0x18] sm:$0xff] %v1074
    %s1081 = scalar_lea.vmem [#allocation4], 96
    %v1082 = vld [vmem:[%s1081] sm:$0xff]
    %v1083 = vld [vmem:[%s1081 + $0x8] sm:$0xff]
    %1084 = vst [vmem:[#allocation3] sm:$0xff] %v1082
    %1085 = vst [vmem:[#allocation3 + $0x10] sm:$0xff] %v1083
    %1086 = vst [vmem:[#allocation3 + $0x8] sm:$0xff] %v1066
    %1087 = vst [vmem:[#allocation3 + $0x18] sm:$0xff] %v1072
    %v1088 = vld [vmem:[#allocation3] sm:$0xff]
    %v1089 = vld [vmem:[#allocation3 + $0x8] sm:$0xff]
    %v1090 = vld [vmem:[#allocation3 + $0x10] sm:$0xff]
    %v1091 = vld [vmem:[#allocation3 + $0x18] sm:$0xff]
    %v1092 = vld [vmem:[#allocation9] sm:$0xff]
    %v1093 = vld [vmem:[#allocation9 + $0x8] sm:$0xff]
    %v1094 = vld [vmem:[#allocation9 + $0x10] sm:$0xff]
    %v1095 = vld [vmem:[#allocation9 + $0x18] sm:$0xff]
    %v1096 = vld [vmem:[#allocation9 + $0x20] sm:$0xff]
    %v1097 = vld [vmem:[#allocation9 + $0x28] sm:$0xff]
    %v1098 = vld [vmem:[#allocation9 + $0x30] sm:$0xff]
    %v1099 = vld [vmem:[#allocation9 + $0x38] sm:$0xff]
    %v1100 = vld [vmem:[#allocation9 + $0x40] sm:$0xff]
    %v1101 = vld [vmem:[#allocation9 + $0x48] sm:$0xff]
    %v1102 = vld [vmem:[#allocation9 + $0x50] sm:$0xff]
    %v1103 = vld [vmem:[#allocation9 + $0x58] sm:$0xff]
    %v1104 = vld [vmem:[#allocation9 + $0x60] sm:$0xff]
    %v1105 = vld [vmem:[#allocation9 + $0x68] sm:$0xff]
    %v1106 = vld [vmem:[#allocation9 + $0x70] sm:$0xff]
    %v1107 = vld [vmem:[#allocation9 + $0x78] sm:$0xff]
    %v1108 = vld [vmem:[#allocation9 + $0x80] sm:$0xff]
    %v1109 = vld [vmem:[#allocation9 + $0x88] sm:$0xff]
    %v1110 = vld [vmem:[#allocation9 + $0x90] sm:$0xff]
    %v1111 = vld [vmem:[#allocation9 + $0x98] sm:$0xff]
    %v1112 = vld [vmem:[#allocation9 + $0xa0] sm:$0xff]
    %v1113 = vld [vmem:[#allocation9 + $0xa8] sm:$0xff]
    %v1114 = vld [vmem:[#allocation9 + $0xb0] sm:$0xff]
    %v1115 = vld [vmem:[#allocation9 + $0xb8] sm:$0xff]
    %v1116 = vld [vmem:[#allocation9 + $0xc0] sm:$0xff]
    %v1117 = vld [vmem:[#allocation9 + $0xc8] sm:$0xff]
    %v1118 = vld [vmem:[#allocation9 + $0xd0] sm:$0xff]
    %v1119 = vld [vmem:[#allocation9 + $0xd8] sm:$0xff]
    %v1120 = vld [vmem:[#allocation9 + $0xe0] sm:$0xff]
    %v1121 = vld [vmem:[#allocation9 + $0xe8] sm:$0xff]
    %v1122 = vld [vmem:[#allocation9 + $0xf0] sm:$0xff]
    %v1123 = vld [vmem:[#allocation9 + $0xf8] sm:$0xff]
    %v1124 = vld [vmem:[#allocation9 + $0x100] sm:$0xff]
    %v1125 = vld [vmem:[#allocation9 + $0x108] sm:$0xff]
    %v1126 = vld [vmem:[#allocation9 + $0x110] sm:$0xff]
    %v1127 = vld [vmem:[#allocation9 + $0x118] sm:$0xff]
    %v1128 = vld [vmem:[#allocation9 + $0x120] sm:$0xff]
    %v1129 = vld [vmem:[#allocation9 + $0x128] sm:$0xff]
    %v1130 = vld [vmem:[#allocation9 + $0x130] sm:$0xff]
    %v1131 = vld [vmem:[#allocation9 + $0x138] sm:$0xff]
    %v1132 = vld [vmem:[#allocation9 + $0x140] sm:$0xff]
    %v1133 = vld [vmem:[#allocation9 + $0x148] sm:$0xff]
    %v1134 = vld [vmem:[#allocation9 + $0x150] sm:$0xff]
    %v1135 = vld [vmem:[#allocation9 + $0x158] sm:$0xff]
    %v1136 = vld [vmem:[#allocation9 + $0x160] sm:$0xff]
    %v1137 = vld [vmem:[#allocation9 + $0x168] sm:$0xff]
    %v1138 = vld [vmem:[#allocation9 + $0x170] sm:$0xff]
    %v1139 = vld [vmem:[#allocation9 + $0x178] sm:$0xff]
    %v1140 = vld [vmem:[#allocation9 + $0x180] sm:$0xff]
    %v1141 = vld [vmem:[#allocation9 + $0x188] sm:$0xff]
    %v1142 = vld [vmem:[#allocation9 + $0x190] sm:$0xff]
    %v1143 = vld [vmem:[#allocation9 + $0x198] sm:$0xff]
    %v1144 = vld [vmem:[#allocation9 + $0x1a0] sm:$0xff]
    %v1145 = vld [vmem:[#allocation9 + $0x1a8] sm:$0xff]
    %v1146 = vld [vmem:[#allocation9 + $0x1b0] sm:$0xff]
    %v1147 = vld [vmem:[#allocation9 + $0x1b8] sm:$0xff]
    %v1148 = vld [vmem:[#allocation9 + $0x1c0] sm:$0xff]
    %v1149 = vld [vmem:[#allocation9 + $0x1c8] sm:$0xff]
    %v1150 = vld [vmem:[#allocation9 + $0x1d0] sm:$0xff]
    %v1151 = vld [vmem:[#allocation9 + $0x1d8] sm:$0xff]
    %v1152 = vld [vmem:[#allocation9 + $0x1e0] sm:$0xff]
    %v1153 = vld [vmem:[#allocation9 + $0x1e8] sm:$0xff]
    %v1154 = vld [vmem:[#allocation9 + $0x1f0] sm:$0xff]
    %v1155 = vld [vmem:[#allocation9 + $0x1f8] sm:$0xff]
    %v1156 = vld [vmem:[%s3] sm:$0x3]
    %v1158 = vlaneseq
    %v1159 = vshrl.u32 %v1158, 7
    %v1160 = vsub.s32 0, %v1159
    %v1161 = vrot.slane %v1156, %v1160
    %v1162 = vlaneseq
    %v1163 = vshrl.u32 %v1162, 7
    %v1164 = vsub.s32 1, %v1163
    %v1165 = vrot.slane %v1156, %v1164
    %1168 = vmatprep.subr.mxu0 %v1123
    %1169 = vmatpush1.msra.mxu0 %v1122
    %1170 = vmatprep.subr.mxu0 %v1121
    %1171 = vmatpush1.msra.mxu0 %v1120
    %1172 = vmatprep.subr.mxu0 %v1119
    %1173 = vmatpush1.msra.mxu0 %v1118
    %1174 = vmatprep.subr.mxu0 %v1117
    %1175 = vmatpush1.msra.mxu0 %v1116
    %1176 = vmatprep.subr.mxu0 %v1115
    %1177 = vmatpush1.msra.mxu0 %v1114
    %1178 = vmatprep.subr.mxu0 %v1113
    %1179 = vmatpush1.msra.mxu0 %v1112
    %1180 = vmatprep.subr.mxu0 %v1111
    %1181 = vmatpush1.msra.mxu0 %v1110
    %1182 = vmatprep.subr.mxu0 %v1109
    %1183 = vmatpush1.msra.mxu0 %v1108
    %1184 = vmatprep.subr.mxu0 %v1107
    %1185 = vmatpush1.msra.mxu0 %v1106
    %1186 = vmatprep.subr.mxu0 %v1105
    %1187 = vmatpush1.msra.mxu0 %v1104
    %1188 = vmatprep.subr.mxu0 %v1103
    %1189 = vmatpush1.msra.mxu0 %v1102
    %1190 = vmatprep.subr.mxu0 %v1101
    %1191 = vmatpush1.msra.mxu0 %v1100
    %1192 = vmatprep.subr.mxu0 %v1099
    %1193 = vmatpush1.msra.mxu0 %v1098
    %1194 = vmatprep.subr.mxu0 %v1097
    %1195 = vmatpush1.msra.mxu0 %v1096
    %1196 = vmatprep.subr.mxu0 %v1095
    %1197 = vmatpush1.msra.mxu0 %v1094
    %1198 = vmatprep.subr.mxu0 %v1093
    %1199 = vmatpush1.msra.mxu0 %v1092
    %1200 = vmatprep.subr.mxu0 %v1155
    %1201 = vmatpush2.msra.mxu0 %v1154
    %1202 = vmatprep.subr.mxu0 %v1153
    %1203 = vmatpush2.msra.mxu0 %v1152
    %1204 = vmatprep.subr.mxu0 %v1151
    %1205 = vmatpush2.msra.mxu0 %v1150
    %1206 = vmatprep.subr.mxu0 %v1149
    %1207 = vmatpush2.msra.mxu0 %v1148
    %1208 = vmatprep.subr.mxu0 %v1147
    %1209 = vmatpush2.msra.mxu0 %v1146
    %1210 = vmatprep.subr.mxu0 %v1145
    %1211 = vmatpush2.msra.mxu0 %v1144
    %1212 = vmatprep.subr.mxu0 %v1143
    %1213 = vmatpush2.msra.mxu0 %v1142
    %1214 = vmatprep.subr.mxu0 %v1141
    %1215 = vmatpush2.msra.mxu0 %v1140
    %1216 = vmatprep.subr.mxu0 %v1139
    %1217 = vmatpush2.msra.mxu0 %v1138
    %1218 = vmatprep.subr.mxu0 %v1137
    %1219 = vmatpush2.msra.mxu0 %v1136
    %1220 = vmatprep.subr.mxu0 %v1135
    %1221 = vmatpush2.msra.mxu0 %v1134
    %1222 = vmatprep.subr.mxu0 %v1133
    %1223 = vmatpush2.msra.mxu0 %v1132
    %1224 = vmatprep.subr.mxu0 %v1131
    %1225 = vmatpush2.msra.mxu0 %v1130
    %1226 = vmatprep.subr.mxu0 %v1129
    %1227 = vmatpush2.msra.mxu0 %v1128
    %1228 = vmatprep.subr.mxu0 %v1127
    %1229 = vmatpush2.msra.mxu0 %v1126
    %1230 = vmatprep.subr.mxu0 %v1125
    %1231 = vmatpush2.msra.mxu0 %v1124
    %1232 = vmatprep.mubr.f32.mxu0 %v1089
    %1233 = vmatmul.mubr.f32.gmra.mxu0 %v1088
    %v1234 = vpop.f32.mrf.mxu0
    %v1235 = vadd.f32 %v1161, %v1234
    %v1236 = vpop.f32.mrf.mxu0
    %v1237 = vadd.f32 %v1165, %v1236
    %1238 = vmatprep.mubr.f32.mxu0 %v1091
    %1239 = vmatmul.mubr.f32.gmra.mxu0 %v1090
    %v1240 = vpop.f32.mrf.mxu0
    %v1241 = vadd.f32 %v1161, %v1240
    %v1242 = vpop.f32.mrf.mxu0
    %v1243 = vadd.f32 %v1165, %v1242
    %1244 = vdwg.mxu0
    %s1245 = scalar_lea.vmem [#allocation10], 192
    %1246 = vst [vmem:[%s1245] sm:$0xff] %v1235
    %1247 = vst [vmem:[%s1245 + $0x8] sm:$0xff] %v1237
    %1248 = vst [vmem:[%s1245 + $0x10] sm:$0xff] %v1241
    %1249 = vst [vmem:[%s1245 + $0x18] sm:$0xff] %v1243
    %s1250 = scalar_lea.vmem [#allocation4], 112
    %v1251 = vld [vmem:[%s1250] sm:$0xff]
    %v1252 = vld [vmem:[%s1250 + $0x8] sm:$0xff]
    %1253 = vst [vmem:[#allocation3] sm:$0xff] %v1251
    %1254 = vst [vmem:[#allocation3 + $0x10] sm:$0xff] %v1252
    %1255 = vst [vmem:[#allocation3 + $0x8] sm:$0xff] %v1235
    %1256 = vst [vmem:[#allocation3 + $0x18] sm:$0xff] %v1241
    %v1257 = vld [vmem:[#allocation3] sm:$0xff]
    %v1258 = vld [vmem:[#allocation3 + $0x8] sm:$0xff]
    %v1259 = vld [vmem:[#allocation3 + $0x10] sm:$0xff]
    %v1260 = vld [vmem:[#allocation3 + $0x18] sm:$0xff]
    %v1261 = vld [vmem:[#allocation9] sm:$0xff]
    %v1262 = vld [vmem:[#allocation9 + $0x8] sm:$0xff]
    %v1263 = vld [vmem:[#allocation9 + $0x10] sm:$0xff]
    %v1264 = vld [vmem:[#allocation9 + $0x18] sm:$0xff]
    %v1265 = vld [vmem:[#allocation9 + $0x20] sm:$0xff]
    %v1266 = vld [vmem:[#allocation9 + $0x28] sm:$0xff]
    %v1267 = vld [vmem:[#allocation9 + $0x30] sm:$0xff]
    %v1268 = vld [vmem:[#allocation9 + $0x38] sm:$0xff]
    %v1269 = vld [vmem:[#allocation9 + $0x40] sm:$0xff]
    %v1270 = vld [vmem:[#allocation9 + $0x48] sm:$0xff]
    %v1271 = vld [vmem:[#allocation9 + $0x50] sm:$0xff]
    %v1272 = vld [vmem:[#allocation9 + $0x58] sm:$0xff]
    %v1273 = vld [vmem:[#allocation9 + $0x60] sm:$0xff]
    %v1274 = vld [vmem:[#allocation9 + $0x68] sm:$0xff]
    %v1275 = vld [vmem:[#allocation9 + $0x70] sm:$0xff]
    %v1276 = vld [vmem:[#allocation9 + $0x78] sm:$0xff]
    %v1277 = vld [vmem:[#allocation9 + $0x80] sm:$0xff]
    %v1278 = vld [vmem:[#allocation9 + $0x88] sm:$0xff]
    %v1279 = vld [vmem:[#allocation9 + $0x90] sm:$0xff]
    %v1280 = vld [vmem:[#allocation9 + $0x98] sm:$0xff]
    %v1281 = vld [vmem:[#allocation9 + $0xa0] sm:$0xff]
    %v1282 = vld [vmem:[#allocation9 + $0xa8] sm:$0xff]
    %v1283 = vld [vmem:[#allocation9 + $0xb0] sm:$0xff]
    %v1284 = vld [vmem:[#allocation9 + $0xb8] sm:$0xff]
    %v1285 = vld [vmem:[#allocation9 + $0xc0] sm:$0xff]
    %v1286 = vld [vmem:[#allocation9 + $0xc8] sm:$0xff]
    %v1287 = vld [vmem:[#allocation9 + $0xd0] sm:$0xff]
    %v1288 = vld [vmem:[#allocation9 + $0xd8] sm:$0xff]
    %v1289 = vld [vmem:[#allocation9 + $0xe0] sm:$0xff]
    %v1290 = vld [vmem:[#allocation9 + $0xe8] sm:$0xff]
    %v1291 = vld [vmem:[#allocation9 + $0xf0] sm:$0xff]
    %v1292 = vld [vmem:[#allocation9 + $0xf8] sm:$0xff]
    %v1293 = vld [vmem:[#allocation9 + $0x100] sm:$0xff]
    %v1294 = vld [vmem:[#allocation9 + $0x108] sm:$0xff]
    %v1295 = vld [vmem:[#allocation9 + $0x110] sm:$0xff]
    %v1296 = vld [vmem:[#allocation9 + $0x118] sm:$0xff]
    %v1297 = vld [vmem:[#allocation9 + $0x120] sm:$0xff]
    %v1298 = vld [vmem:[#allocation9 + $0x128] sm:$0xff]
    %v1299 = vld [vmem:[#allocation9 + $0x130] sm:$0xff]
    %v1300 = vld [vmem:[#allocation9 + $0x138] sm:$0xff]
    %v1301 = vld [vmem:[#allocation9 + $0x140] sm:$0xff]
    %v1302 = vld [vmem:[#allocation9 + $0x148] sm:$0xff]
    %v1303 = vld [vmem:[#allocation9 + $0x150] sm:$0xff]
    %v1304 = vld [vmem:[#allocation9 + $0x158] sm:$0xff]
    %v1305 = vld [vmem:[#allocation9 + $0x160] sm:$0xff]
    %v1306 = vld [vmem:[#allocation9 + $0x168] sm:$0xff]
    %v1307 = vld [vmem:[#allocation9 + $0x170] sm:$0xff]
    %v1308 = vld [vmem:[#allocation9 + $0x178] sm:$0xff]
    %v1309 = vld [vmem:[#allocation9 + $0x180] sm:$0xff]
    %v1310 = vld [vmem:[#allocation9 + $0x188] sm:$0xff]
    %v1311 = vld [vmem:[#allocation9 + $0x190] sm:$0xff]
    %v1312 = vld [vmem:[#allocation9 + $0x198] sm:$0xff]
    %v1313 = vld [vmem:[#allocation9 + $0x1a0] sm:$0xff]
    %v1314 = vld [vmem:[#allocation9 + $0x1a8] sm:$0xff]
    %v1315 = vld [vmem:[#allocation9 + $0x1b0] sm:$0xff]
    %v1316 = vld [vmem:[#allocation9 + $0x1b8] sm:$0xff]
    %v1317 = vld [vmem:[#allocation9 + $0x1c0] sm:$0xff]
    %v1318 = vld [vmem:[#allocation9 + $0x1c8] sm:$0xff]
    %v1319 = vld [vmem:[#allocation9 + $0x1d0] sm:$0xff]
    %v1320 = vld [vmem:[#allocation9 + $0x1d8] sm:$0xff]
    %v1321 = vld [vmem:[#allocation9 + $0x1e0] sm:$0xff]
    %v1322 = vld [vmem:[#allocation9 + $0x1e8] sm:$0xff]
    %v1323 = vld [vmem:[#allocation9 + $0x1f0] sm:$0xff]
    %v1324 = vld [vmem:[#allocation9 + $0x1f8] sm:$0xff]
    %v1325 = vld [vmem:[%s3] sm:$0x3]
    %v1327 = vlaneseq
    %v1328 = vshrl.u32 %v1327, 7
    %v1329 = vsub.s32 0, %v1328
    %v1330 = vrot.slane %v1325, %v1329
    %v1331 = vlaneseq
    %v1332 = vshrl.u32 %v1331, 7
    %v1333 = vsub.s32 1, %v1332
    %v1334 = vrot.slane %v1325, %v1333
    %1337 = vmatprep.subr.mxu0 %v1292
    %1338 = vmatpush1.msra.mxu0 %v1291
    %1339 = vmatprep.subr.mxu0 %v1290
    %1340 = vmatpush1.msra.mxu0 %v1289
    %1341 = vmatprep.subr.mxu0 %v1288
    %1342 = vmatpush1.msra.mxu0 %v1287
    %1343 = vmatprep.subr.mxu0 %v1286
    %1344 = vmatpush1.msra.mxu0 %v1285
    %1345 = vmatprep.subr.mxu0 %v1284
    %1346 = vmatpush1.msra.mxu0 %v1283
    %1347 = vmatprep.subr.mxu0 %v1282
    %1348 = vmatpush1.msra.mxu0 %v1281
    %1349 = vmatprep.subr.mxu0 %v1280
    %1350 = vmatpush1.msra.mxu0 %v1279
    %1351 = vmatprep.subr.mxu0 %v1278
    %1352 = vmatpush1.msra.mxu0 %v1277
    %1353 = vmatprep.subr.mxu0 %v1276
    %1354 = vmatpush1.msra.mxu0 %v1275
    %1355 = vmatprep.subr.mxu0 %v1274
    %1356 = vmatpush1.msra.mxu0 %v1273
    %1357 = vmatprep.subr.mxu0 %v1272
    %1358 = vmatpush1.msra.mxu0 %v1271
    %1359 = vmatprep.subr.mxu0 %v1270
    %1360 = vmatpush1.msra.mxu0 %v1269
    %1361 = vmatprep.subr.mxu0 %v1268
    %1362 = vmatpush1.msra.mxu0 %v1267
    %1363 = vmatprep.subr.mxu0 %v1266
    %1364 = vmatpush1.msra.mxu0 %v1265
    %1365 = vmatprep.subr.mxu0 %v1264
    %1366 = vmatpush1.msra.mxu0 %v1263
    %1367 = vmatprep.subr.mxu0 %v1262
    %1368 = vmatpush1.msra.mxu0 %v1261
    %1369 = vmatprep.subr.mxu0 %v1324
    %1370 = vmatpush2.msra.mxu0 %v1323
    %1371 = vmatprep.subr.mxu0 %v1322
    %1372 = vmatpush2.msra.mxu0 %v1321
    %1373 = vmatprep.subr.mxu0 %v1320
    %1374 = vmatpush2.msra.mxu0 %v1319
    %1375 = vmatprep.subr.mxu0 %v1318
    %1376 = vmatpush2.msra.mxu0 %v1317
    %1377 = vmatprep.subr.mxu0 %v1316
    %1378 = vmatpush2.msra.mxu0 %v1315
    %1379 = vmatprep.subr.mxu0 %v1314
    %1380 = vmatpush2.msra.mxu0 %v1313
    %1381 = vmatprep.subr.mxu0 %v1312
    %1382 = vmatpush2.msra.mxu0 %v1311
    %1383 = vmatprep.subr.mxu0 %v1310
    %1384 = vmatpush2.msra.mxu0 %v1309
    %1385 = vmatprep.subr.mxu0 %v1308
    %1386 = vmatpush2.msra.mxu0 %v1307
    %1387 = vmatprep.subr.mxu0 %v1306
    %1388 = vmatpush2.msra.mxu0 %v1305
    %1389 = vmatprep.subr.mxu0 %v1304
    %1390 = vmatpush2.msra.mxu0 %v1303
    %1391 = vmatprep.subr.mxu0 %v1302
    %1392 = vmatpush2.msra.mxu0 %v1301
    %1393 = vmatprep.subr.mxu0 %v1300
    %1394 = vmatpush2.msra.mxu0 %v1299
    %1395 = vmatprep.subr.mxu0 %v1298
    %1396 = vmatpush2.msra.mxu0 %v1297
    %1397 = vmatprep.subr.mxu0 %v1296
    %1398 = vmatpush2.msra.mxu0 %v1295
    %1399 = vmatprep.subr.mxu0 %v1294
    %1400 = vmatpush2.msra.mxu0 %v1293
    %1401 = vmatprep.mubr.f32.mxu0 %v1258
    %1402 = vmatmul.mubr.f32.gmra.mxu0 %v1257
    %v1403 = vpop.f32.mrf.mxu0
    %v1404 = vadd.f32 %v1330, %v1403
    %v1405 = vpop.f32.mrf.mxu0
    %v1406 = vadd.f32 %v1334, %v1405
    %1407 = vmatprep.mubr.f32.mxu0 %v1260
    %1408 = vmatmul.mubr.f32.gmra.mxu0 %v1259
    %v1409 = vpop.f32.mrf.mxu0
    %v1410 = vadd.f32 %v1330, %v1409
    %v1411 = vpop.f32.mrf.mxu0
    %v1412 = vadd.f32 %v1334, %v1411
    %1413 = vdwg.mxu0
    %s1414 = scalar_lea.vmem [#allocation10], 224
    %1415 = vst [vmem:[%s1414] sm:$0xff] %v1404
    %1416 = vst [vmem:[%s1414 + $0x8] sm:$0xff] %v1406
    %1417 = vst [vmem:[%s1414 + $0x10] sm:$0xff] %v1410
    %1418 = vst [vmem:[%s1414 + $0x18] sm:$0xff] %v1412
    %1419 = vst [vmem:[#allocation2] sm:$0xff] %v1404
    %1420 = vst [vmem:[#allocation2 + $0x8] sm:$0xff] %v1410
    // Predicated region
    $region34: #{tpu_custom_call.1} parent=1 // pred_check
      _
    $region35: #{tpu_custom_call.1} parent=1 // pred_check_branch
      %1422 = sbr.rel (0) target = $region37
    $region36: #{tpu_custom_call.1} parent=1 // pred_region
      %s1424 = ssub.s32 4096, 4096
      %1425 = vsyncadd [#allocation6], %s1424
      %s1426 = sshll.u32 [#allocation10], 4
      %s1427 = int_to_ptr.vmem [resolvable:$true] %s1426
      %1432 = dma.vmem_to_hbm [thread:$0]  %s1427, 4096, %s4, [#allocation6], 256, 256, 16
    $region37: #{tpu_custom_call.1} parent=1 // pred_fallthru
      _
    // Predicated region
    $region38: #{tpu_custom_call.1} parent=1 // pred_check
      _
    $region39: #{tpu_custom_call.1} parent=1 // pred_check_branch
      %1434 = sbr.rel (0) target = $region41
    $region40: #{tpu_custom_call.1} parent=1 // pred_region
      %1435 = dma.done [#allocation6], 4096
    $region41: #{tpu_custom_call.1} parent=1 // pred_fallthru
      _
    %1436 = vsyncpa [#allocation5], 1
    %1437 = vsyncpa [#allocation8], 1
    %1438 = vsyncpa [#allocation6], 1

</llo_original>
